<compile_context>
chip_gen: v5e
topology: v5e:2x2
jax: 0.10.0
libtpu: 0.0.40
codegen_flags: <defaults>
</compile_context>

<pallas_src>
import functools
import math

import jax
import jax.numpy as jnp
from jax.experimental import pallas as pl
from jax.experimental.pallas import tpu as pltpu

HIDDEN_SIZES = [256, 128, 32]
INPUT_SIZE = 521
OUTPUT_SIZE = 3
LATENT = HIDDEN_SIZES[2]

LANE = 128
SUBLANE = 8
MAX_TILE_B = 1024          # sweepable (1024-2048 on v5e/v6e); 1024 is safe under v7x's 64 MiB VMEM
OUT_PAD = LANE             # all three heads (3 + 4 + 4 = 11 cols) packed into one 128-lane slab

# Packed-output column ranges: head1 -> [0:3), head2 -> [3:7), head3 -> [7:11)
H1_LO, H1_HI = 0, OUTPUT_SIZE
H2_LO, H2_HI = H1_HI, H1_HI + OUTPUT_SIZE + 1
H3_LO, H3_HI = H2_HI, H2_HI + OUTPUT_SIZE + 1


def _round_up(x, m):
    return ((x + m - 1) // m) * m


# ----------------------------------------------------------------------------
# Kernel
# ----------------------------------------------------------------------------
def unrolled_kernel(
    x_ref,
    # fused x-projection + share1 params (share1's latent weight omitted: latent input == 0)
    w1x_fused, s1_b1, s1_w2, s1_b2, s1_w3, s1_b3, s1_w4p,
    # share2 params (used for both the 2nd and 3rd heads, as in the PyTorch forward)
    s2_w1h, s2_b1, s2_w2, s2_b2, s2_w3, s2_b3, s2_w4p_h2, s2_w4p_h3,
    # packed head biases
    b4_packed,
    # single packed output
    out_ref,
):
    # x arrives f32 straight from HBM (no wrapper pad/cast pass); bf16 cast on the VPU here.
    x = x_ref[...].astype(jnp.bfloat16)                                   # (TILE_B, 521)

    # Fused x-projection: one MXU pass of x against [W1x_share1 | W1x_share2].
    xw = jnp.dot(x, w1x_fused[...], preferred_element_type=jnp.float32)   # (TILE_B, 512) f32
    xw_s1 = xw[:, :HIDDEN_SIZES[0]]          # share1's fl1 x-term
    xw_s2 = xw[:, HIDDEN_SIZES[0]:]          # share2's fl1 x-term (reused for heads 2 & 3)

    # ---- share1: latent input is all-zero, so its latent dot is skipped ----
    z = jnp.maximum(xw_s1 + s1_b1[...], 0.0).astype(jnp.bfloat16)                       # relu(fl1)
    z = jnp.maximum(jnp.dot(z, s1_w2[...], preferred_element_type=jnp.float32)
                    + s1_b2[...], 0.0).astype(jnp.bfloat16)                             # relu(fl2)
    lat = jnp.maximum(jnp.dot(z, s1_w3[...], preferred_element_type=jnp.float32)
                      + s1_b3[...], 0.0)                                                # relu(fl3)
    o1 = jnp.dot(lat.astype(jnp.bfloat16), s1_w4p[...],
                 preferred_element_type=jnp.float32)                                    # fl4 (lanes 0:3)

    # ---- share2 block (applied twice, exactly as in the PyTorch forward) ----
    def share2_block(lat_f32, w4p):
        z = (xw_s2
             + jnp.dot(lat_f32.astype(jnp.bfloat16), s2_w1h[...],
                       preferred_element_type=jnp.float32)
             + s2_b1[...])
        z = jnp.maximum(z, 0.0).astype(jnp.bfloat16)
        z = jnp.maximum(jnp.dot(z, s2_w2[...], preferred_element_type=jnp.float32)
                        + s2_b2[...], 0.0).astype(jnp.bfloat16)
        lat_new = jnp.maximum(jnp.dot(z, s2_w3[...], preferred_element_type=jnp.float32)
                              + s2_b3[...], 0.0)
        head = jnp.dot(lat_new.astype(jnp.bfloat16), w4p[...],
                       preferred_element_type=jnp.float32)
        return head, lat_new

    o2, lat = share2_block(lat, s2_w4p_h2)   # lanes 3:7
    o3, _ = share2_block(lat, s2_w4p_h3)     # lanes 7:11

    # Heads occupy disjoint lanes of the packed 128-wide slab -> one unmasked 128-lane store.
    out_ref[...] = o1 + o2 + o3 + b4_packed[...]


# ----------------------------------------------------------------------------
# Parameter init (deterministic, PyTorch-Linear-style uniform bounds) + packing
# ----------------------------------------------------------------------------
def _init_linear(key, fan_in, fan_out):
    kw, kb = jax.random.split(key)
    bound = 1.0 / math.sqrt(fan_in)
    w = jax.random.uniform(kw, (fan_in, fan_out), jnp.float32, -bound, bound)
    b = jax.random.uniform(kb, (1, fan_out), jnp.float32, -bound, bound)
    return w, b


def init_net_mlp_latent(key, input_size, hidden_sizes, output_size):
    """Raw f32 params for one NetMLPLatent; weights stored (in, out) so y = x @ W + b."""
    latent = hidden_sizes[2]
    k1, k2, k3, k4 = jax.random.split(key, 4)
    w1, b1 = _init_linear(k1, input_size + latent, hidden_sizes[0])
    w2, b2 = _init_linear(k2, hidden_sizes[0], hidden_sizes[1])
    w3, b3 = _init_linear(k3, hidden_sizes[1], hidden_sizes[2])
    w4, b4 = _init_linear(k4, hidden_sizes[2], output_size)
    return (w1, b1, w2, b2, w3, b3, w4, b4)


def pack_kernel_params(share1_params, share2_params):
    """One-time packing: split fl1 weights, fuse the two x-projections, lane-pack the
    3 output heads into 128 lanes, cast weights to bf16 (biases stay f32)."""
    w1_1, b1_1, w2_1, b2_1, w3_1, b3_1, w4_1, b4_1 = share1_params
    w1_2, b1_2, w2_2, b2_2, w3_2, b3_2, w4_2, b4_2 = share2_params

    # torch.cat((x, h), 1) @ W1  ==  x @ W1[:521] + h @ W1[521:].
    # share1's latent part is dropped entirely (its latent input is identically zero).
    w1x_fused = jnp.concatenate([w1_1[:INPUT_SIZE], w1_2[:INPUT_SIZE]], axis=1)   # (521, 512)
    s2_w1h = w1_2[INPUT_SIZE:]                                                    # (32, 256)

    def lane_pack_w(w, lo):
        return jnp.zeros((LATENT, OUT_PAD), jnp.float32).at[:, lo:lo + w.shape[1]].set(w)

    s1_w4p = lane_pack_w(w4_1, H1_LO)        # cols 0:3
    s2_w4p_h2 = lane_pack_w(w4_2, H2_LO)     # cols 3:7
    s2_w4p_h3 = lane_pack_w(w4_2, H3_LO)     # cols 7:11
    b4_packed = (jnp.zeros((1, OUT_PAD), jnp.float32)
                 .at[:, H1_LO:H1_HI].set(b4_1)
                 .at[:, H2_LO:H2_HI].set(b4_2)
                 .at[:, H3_LO:H3_HI].set(b4_2))

    bf = lambda a: a.astype(jnp.bfloat16)
    return (bf(w1x_fused), b1_1, bf(w2_1), b2_1, bf(w3_1), b3_1, bf(s1_w4p),
            bf(s2_w1h), b1_2, bf(w2_2), b2_2, bf(w3_2), b3_2,
            bf(s2_w4p_h2), bf(s2_w4p_h3),
            b4_packed)


# ----------------------------------------------------------------------------
# Wrapper
# ----------------------------------------------------------------------------
@functools.partial(jax.jit, static_argnames=("batch_size",))
def net_mlp_unrolled(x, kernel_params, batch_size):
    B, F = x.shape
    assert F == INPUT_SIZE and B == batch_size

    # Balanced batch tiling: minimise padded rows, and guarantee >= 2 grid steps for
    # B > 8 so dimension_semantics=("parallel",) can use both TensorCores on v7x.
    n_tiles = max(pl.cdiv(B, MAX_TILE_B), 2 if B > SUBLANE else 1)
    tile_b = _round_up(pl.cdiv(B, n_tiles), SUBLANE)
    grid = pl.cdiv(B, tile_b)            # partial last block handled by Pallas

    x_spec = pl.BlockSpec((tile_b, INPUT_SIZE), lambda i: (i, 0))
    # Constant block index -> weights / biases stay VMEM-resident across grid steps.
    # TODO(synk): pipeline_mode=pl.Buffered(1) on these would also drop their 2nd VMEM buffer.
    w_specs = [pl.BlockSpec(p.shape, lambda i: (0, 0)) for p in kernel_params]
    out_spec = pl.BlockSpec((tile_b, OUT_PAD), lambda i: (i, 0))

    # Advisory cost estimate for XLA's scheduler.
    h0, h1, h2 = HIDDEN_SIZES
    flops = 2 * B * (
        INPUT_SIZE * 2 * h0                                     # fused x-projection
        + (h0 * h1 + h1 * h2 + h2 * OUT_PAD)                    # share1 tail
        + 2 * (h2 * h0 + h0 * h1 + h1 * h2 + h2 * OUT_PAD))     # share2 heads 2 & 3
    bytes_accessed = int(
        x.size * x.dtype.itemsize
        + sum(p.size * p.dtype.itemsize for p in kernel_params)
        + B * OUT_PAD * 4)
    cost = pl.CostEstimate(flops=flops, transcendentals=0, bytes_accessed=bytes_accessed)

    out = pl.pallas_call(
        unrolled_kernel,
        out_shape=jax.ShapeDtypeStruct((B, OUT_PAD), jnp.float32),
        grid_spec=pltpu.PrefetchScalarGridSpec(
            num_scalar_prefetch=0,
            grid=(grid,),
            in_specs=[x_spec] + w_specs,
            out_specs=out_spec,
        ),
        compiler_params=pltpu.CompilerParams(
            dimension_semantics=("parallel",),
            vmem_limit_bytes=48 << 20,
        ),
        cost_estimate=cost,
    )(x, *kernel_params)

    share1 = out[:, H1_LO:H1_HI]       # (B, 3)
    share2 = out[:, H2_LO:H2_HI]       # (B, 4)
    share3 = out[:, H3_LO:H3_HI]       # (B, 4)
    return share1, share2, share3


# ----------------------------------------------------------------------------
# Pure-JAX reference (same bf16-weight / f32-accumulate recipe, raw un-packed params)
# ----------------------------------------------------------------------------
def _mlp_latent_ref(xb, h, params):
    w1, b1, w2, b2, w3, b3, w4, b4 = params
    bf = jnp.bfloat16
    z = (jnp.dot(xb, w1[:INPUT_SIZE].astype(bf), preferred_element_type=jnp.float32)
         + jnp.dot(h.astype(bf), w1[INPUT_SIZE:].astype(bf),
                   preferred_element_type=jnp.float32)
         + b1)
    z = jnp.maximum(z, 0.0).astype(bf)
    z = jnp.maximum(jnp.dot(z, w2.astype(bf), preferred_element_type=jnp.float32) + b2, 0.0)
    z = z.astype(bf)
    lat = jnp.maximum(jnp.dot(z, w3.astype(bf), preferred_element_type=jnp.float32) + b3, 0.0)
    out = jnp.dot(lat.astype(bf), w4.astype(bf), preferred_element_type=jnp.float32) + b4
    return out, lat


def net_mlp_unrolled_ref(x, share1_params, share2_params):
    xb = x.astype(jnp.bfloat16)
    h0 = jnp.zeros((x.shape[0], LATENT), jnp.float32)
    o1, lat = _mlp_latent_ref(xb, h0, share1_params)
    o2, lat = _mlp_latent_ref(xb, lat, share2_params)
    o3, _ = _mlp_latent_ref(xb, lat, share2_params)
    return o1, o2, o3


if __name__ == "__main__":
    key = jax.random.PRNGKey(0)
    kx, k1, k2, k3 = jax.random.split(key, 4)

    batch_size = 2
    x = jax.random.normal(kx, (batch_size, INPUT_SIZE), jnp.float32)

    share1_raw = init_net_mlp_latent(k1, INPUT_SIZE, HIDDEN_SIZES, OUTPUT_SIZE)
    share2_raw = init_net_mlp_latent(k2, INPUT_SIZE, HIDDEN_SIZES, OUTPUT_SIZE + 1)
    # share3 exists in the PyTorch module but its params are unused in forward().
    _share3_raw = init_net_mlp_latent(k3, INPUT_SIZE, HIDDEN_SIZES, OUTPUT_SIZE + 1)

    kernel_params = pack_kernel_params(share1_raw, share2_raw)

    outs = net_mlp_unrolled(x, kernel_params, batch_size)
    outs = jax.block_until_ready(outs)

    refs = net_mlp_unrolled_ref(x, share1_raw, share2_raw)
    for o, r in zip(outs, refs):
        assert o.shape == r.shape, (o.shape, r.shape)
        assert jnp.allclose(o, r, atol=2e-2, rtol=2e-2), float(jnp.max(jnp.abs(o - r)))

    print("KERNEL_OK")
</pallas_src>

<mosaic_0001>
module attributes {stable_mosaic.version = 11 : i64} {
  func.func @unrolled_kernel(%arg0: i32, %arg1: memref<8x521xf32, #tpu.memory_space<vmem>>, %arg2: memref<521x512xbf16, #tpu.memory_space<vmem>>, %arg3: memref<1x256xf32, #tpu.memory_space<vmem>>, %arg4: memref<256x128xbf16, #tpu.memory_space<vmem>>, %arg5: memref<1x128xf32, #tpu.memory_space<vmem>>, %arg6: memref<128x32xbf16, #tpu.memory_space<vmem>>, %arg7: memref<1x32xf32, #tpu.memory_space<vmem>>, %arg8: memref<32x128xbf16, #tpu.memory_space<vmem>>, %arg9: memref<32x256xbf16, #tpu.memory_space<vmem>>, %arg10: memref<1x256xf32, #tpu.memory_space<vmem>>, %arg11: memref<256x128xbf16, #tpu.memory_space<vmem>>, %arg12: memref<1x128xf32, #tpu.memory_space<vmem>>, %arg13: memref<128x32xbf16, #tpu.memory_space<vmem>>, %arg14: memref<1x32xf32, #tpu.memory_space<vmem>>, %arg15: memref<32x128xbf16, #tpu.memory_space<vmem>>, %arg16: memref<32x128xbf16, #tpu.memory_space<vmem>>, %arg17: memref<1x128xf32, #tpu.memory_space<vmem>>, %arg18: memref<8x128xf32, #tpu.memory_space<vmem>>) attributes {dimension_semantics = [#tpu.dimension_semantics<parallel>], iteration_bounds = array<i64: 1>, scalar_prefetch = 0 : i64, scratch_operands = 0 : i64, tpu.core_type = #tpu.core_type<tc>, window_params = [{transform_indices = @transform_0, window_bounds = array<i64: 8, 521>}, {pipeline_mode = #tpu.pipeline_mode<synchronous>, transform_indices = @transform_1, window_bounds = array<i64: 521, 512>}, {pipeline_mode = #tpu.pipeline_mode<synchronous>, transform_indices = @transform_2, window_bounds = array<i64: 1, 256>}, {pipeline_mode = #tpu.pipeline_mode<synchronous>, transform_indices = @transform_3, window_bounds = array<i64: 256, 128>}, {pipeline_mode = #tpu.pipeline_mode<synchronous>, transform_indices = @transform_4, window_bounds = array<i64: 1, 128>}, {pipeline_mode = #tpu.pipeline_mode<synchronous>, transform_indices = @transform_5, window_bounds = array<i64: 128, 32>}, {pipeline_mode = #tpu.pipeline_mode<synchronous>, transform_indices = @transform_6, window_bounds = array<i64: 1, 32>}, {pipeline_mode = #tpu.pipeline_mode<synchronous>, transform_indices = @transform_7, window_bounds = array<i64: 32, 128>}, {pipeline_mode = #tpu.pipeline_mode<synchronous>, transform_indices = @transform_8, window_bounds = array<i64: 32, 256>}, {pipeline_mode = #tpu.pipeline_mode<synchronous>, transform_indices = @transform_9, window_bounds = array<i64: 1, 256>}, {pipeline_mode = #tpu.pipeline_mode<synchronous>, transform_indices = @transform_10, window_bounds = array<i64: 256, 128>}, {pipeline_mode = #tpu.pipeline_mode<synchronous>, transform_indices = @transform_11, window_bounds = array<i64: 1, 128>}, {pipeline_mode = #tpu.pipeline_mode<synchronous>, transform_indices = @transform_12, window_bounds = array<i64: 128, 32>}, {pipeline_mode = #tpu.pipeline_mode<synchronous>, transform_indices = @transform_13, window_bounds = array<i64: 1, 32>}, {pipeline_mode = #tpu.pipeline_mode<synchronous>, transform_indices = @transform_14, window_bounds = array<i64: 32, 128>}, {pipeline_mode = #tpu.pipeline_mode<synchronous>, transform_indices = @transform_15, window_bounds = array<i64: 32, 128>}, {pipeline_mode = #tpu.pipeline_mode<synchronous>, transform_indices = @transform_16, window_bounds = array<i64: 1, 128>}, {transform_indices = @transform_17, window_bounds = array<i64: 8, 128>}]} {
    %c0 = arith.constant 0 : index
    %c0_0 = arith.constant 0 : index
    %0 = vector.load %arg1[%c0, %c0_0] : memref<8x521xf32, #tpu.memory_space<vmem>>, vector<8x521xf32>
    %1 = arith.truncf %0 : vector<8x521xf32> to vector<8x521xbf16>
    %c0_1 = arith.constant 0 : index
    %c0_2 = arith.constant 0 : index
    %2 = vector.load %arg2[%c0_1, %c0_2] : memref<521x512xbf16, #tpu.memory_space<vmem>>, vector<521x512xbf16>
    %cst = arith.constant dense<0.000000e+00> : vector<8x512xf32>
    %3 = tpu.matmul %1, %2, %cst {dimension_numbers = #tpu.dot_dimension_numbers<[1], [0], [0], [1], [0, 0, 1, 1], [], []>} : vector<8x521xbf16>, vector<521x512xbf16>, vector<8x512xf32> -> vector<8x512xf32>
    %4 = vector.extract_strided_slice %3 {offsets = [0, 0], sizes = [8, 256], strides = [1, 1]} : vector<8x512xf32> to vector<8x256xf32>
    %5 = vector.extract_strided_slice %3 {offsets = [0, 256], sizes = [8, 256], strides = [1, 1]} : vector<8x512xf32> to vector<8x256xf32>
    %c0_3 = arith.constant 0 : index
    %c0_4 = arith.constant 0 : index
    %6 = vector.load %arg3[%c0_3, %c0_4] : memref<1x256xf32, #tpu.memory_space<vmem>>, vector<1x256xf32>
    %7 = vector.broadcast %6 : vector<1x256xf32> to vector<8x256xf32>
    %8 = arith.addf %4, %7 : vector<8x256xf32>
    %cst_5 = arith.constant 0.000000e+00 : f32
    %9 = vector.broadcast %cst_5 : f32 to vector<8x256xf32>
    %10 = arith.maximumf %8, %9 : vector<8x256xf32>
    %11 = arith.truncf %10 : vector<8x256xf32> to vector<8x256xbf16>
    %c0_6 = arith.constant 0 : index
    %c0_7 = arith.constant 0 : index
    %12 = vector.load %arg4[%c0_6, %c0_7] : memref<256x128xbf16, #tpu.memory_space<vmem>>, vector<256x128xbf16>
    %cst_8 = arith.constant dense<0.000000e+00> : vector<8x128xf32>
    %13 = tpu.matmul %11, %12, %cst_8 {dimension_numbers = #tpu.dot_dimension_numbers<[1], [0], [0], [1], [0, 0, 1, 1], [], []>} : vector<8x256xbf16>, vector<256x128xbf16>, vector<8x128xf32> -> vector<8x128xf32>
    %c0_9 = arith.constant 0 : index
    %c0_10 = arith.constant 0 : index
    %14 = vector.load %arg5[%c0_9, %c0_10] : memref<1x128xf32, #tpu.memory_space<vmem>>, vector<1x128xf32>
    %15 = vector.broadcast %14 : vector<1x128xf32> to vector<8x128xf32>
    %16 = arith.addf %13, %15 : vector<8x128xf32>
    %cst_11 = arith.constant 0.000000e+00 : f32
    %17 = vector.broadcast %cst_11 : f32 to vector<8x128xf32>
    %18 = arith.maximumf %16, %17 : vector<8x128xf32>
    %19 = arith.truncf %18 : vector<8x128xf32> to vector<8x128xbf16>
    %c0_12 = arith.constant 0 : index
    %c0_13 = arith.constant 0 : index
    %20 = vector.load %arg6[%c0_12, %c0_13] : memref<128x32xbf16, #tpu.memory_space<vmem>>, vector<128x32xbf16>
    %cst_14 = arith.constant dense<0.000000e+00> : vector<8x32xf32>
    %21 = tpu.matmul %19, %20, %cst_14 {dimension_numbers = #tpu.dot_dimension_numbers<[1], [0], [0], [1], [0, 0, 1, 1], [], []>} : vector<8x128xbf16>, vector<128x32xbf16>, vector<8x32xf32> -> vector<8x32xf32>
    %c0_15 = arith.constant 0 : index
    %c0_16 = arith.constant 0 : index
    %22 = vector.load %arg7[%c0_15, %c0_16] : memref<1x32xf32, #tpu.memory_space<vmem>>, vector<1x32xf32>
    %23 = vector.broadcast %22 : vector<1x32xf32> to vector<8x32xf32>
    %24 = arith.addf %21, %23 : vector<8x32xf32>
    %cst_17 = arith.constant 0.000000e+00 : f32
    %25 = vector.broadcast %cst_17 : f32 to vector<8x32xf32>
    %26 = arith.maximumf %24, %25 : vector<8x32xf32>
    %27 = arith.truncf %26 : vector<8x32xf32> to vector<8x32xbf16>
    %c0_18 = arith.constant 0 : index
    %c0_19 = arith.constant 0 : index
    %28 = vector.load %arg8[%c0_18, %c0_19] : memref<32x128xbf16, #tpu.memory_space<vmem>>, vector<32x128xbf16>
    %cst_20 = arith.constant dense<0.000000e+00> : vector<8x128xf32>
    %29 = tpu.matmul %27, %28, %cst_20 {dimension_numbers = #tpu.dot_dimension_numbers<[1], [0], [0], [1], [0, 0, 1, 1], [], []>} : vector<8x32xbf16>, vector<32x128xbf16>, vector<8x128xf32> -> vector<8x128xf32>
    %30 = arith.truncf %26 : vector<8x32xf32> to vector<8x32xbf16>
    %c0_21 = arith.constant 0 : index
    %c0_22 = arith.constant 0 : index
    %31 = vector.load %arg9[%c0_21, %c0_22] : memref<32x256xbf16, #tpu.memory_space<vmem>>, vector<32x256xbf16>
    %cst_23 = arith.constant dense<0.000000e+00> : vector<8x256xf32>
    %32 = tpu.matmul %30, %31, %cst_23 {dimension_numbers = #tpu.dot_dimension_numbers<[1], [0], [0], [1], [0, 0, 1, 1], [], []>} : vector<8x32xbf16>, vector<32x256xbf16>, vector<8x256xf32> -> vector<8x256xf32>
    %33 = arith.addf %5, %32 : vector<8x256xf32>
    %c0_24 = arith.constant 0 : index
    %c0_25 = arith.constant 0 : index
    %34 = vector.load %arg10[%c0_24, %c0_25] : memref<1x256xf32, #tpu.memory_space<vmem>>, vector<1x256xf32>
    %35 = vector.broadcast %34 : vector<1x256xf32> to vector<8x256xf32>
    %36 = arith.addf %33, %35 : vector<8x256xf32>
    %cst_26 = arith.constant 0.000000e+00 : f32
    %37 = vector.broadcast %cst_26 : f32 to vector<8x256xf32>
    %38 = arith.maximumf %36, %37 : vector<8x256xf32>
    %39 = arith.truncf %38 : vector<8x256xf32> to vector<8x256xbf16>
    %c0_27 = arith.constant 0 : index
    %c0_28 = arith.constant 0 : index
    %40 = vector.load %arg11[%c0_27, %c0_28] : memref<256x128xbf16, #tpu.memory_space<vmem>>, vector<256x128xbf16>
    %cst_29 = arith.constant dense<0.000000e+00> : vector<8x128xf32>
    %41 = tpu.matmul %39, %40, %cst_29 {dimension_numbers = #tpu.dot_dimension_numbers<[1], [0], [0], [1], [0, 0, 1, 1], [], []>} : vector<8x256xbf16>, vector<256x128xbf16>, vector<8x128xf32> -> vector<8x128xf32>
    %c0_30 = arith.constant 0 : index
    %c0_31 = arith.constant 0 : index
    %42 = vector.load %arg12[%c0_30, %c0_31] : memref<1x128xf32, #tpu.memory_space<vmem>>, vector<1x128xf32>
    %43 = vector.broadcast %42 : vector<1x128xf32> to vector<8x128xf32>
    %44 = arith.addf %41, %43 : vector<8x128xf32>
    %cst_32 = arith.constant 0.000000e+00 : f32
    %45 = vector.broadcast %cst_32 : f32 to vector<8x128xf32>
    %46 = arith.maximumf %44, %45 : vector<8x128xf32>
    %47 = arith.truncf %46 : vector<8x128xf32> to vector<8x128xbf16>
    %c0_33 = arith.constant 0 : index
    %c0_34 = arith.constant 0 : index
    %48 = vector.load %arg13[%c0_33, %c0_34] : memref<128x32xbf16, #tpu.memory_space<vmem>>, vector<128x32xbf16>
    %cst_35 = arith.constant dense<0.000000e+00> : vector<8x32xf32>
    %49 = tpu.matmul %47, %48, %cst_35 {dimension_numbers = #tpu.dot_dimension_numbers<[1], [0], [0], [1], [0, 0, 1, 1], [], []>} : vector<8x128xbf16>, vector<128x32xbf16>, vector<8x32xf32> -> vector<8x32xf32>
    %c0_36 = arith.constant 0 : index
    %c0_37 = arith.constant 0 : index
    %50 = vector.load %arg14[%c0_36, %c0_37] : memref<1x32xf32, #tpu.memory_space<vmem>>, vector<1x32xf32>
    %51 = vector.broadcast %50 : vector<1x32xf32> to vector<8x32xf32>
    %52 = arith.addf %49, %51 : vector<8x32xf32>
    %cst_38 = arith.constant 0.000000e+00 : f32
    %53 = vector.broadcast %cst_38 : f32 to vector<8x32xf32>
    %54 = arith.maximumf %52, %53 : vector<8x32xf32>
    %55 = arith.truncf %54 : vector<8x32xf32> to vector<8x32xbf16>
    %c0_39 = arith.constant 0 : index
    %c0_40 = arith.constant 0 : index
    %56 = vector.load %arg15[%c0_39, %c0_40] : memref<32x128xbf16, #tpu.memory_space<vmem>>, vector<32x128xbf16>
    %cst_41 = arith.constant dense<0.000000e+00> : vector<8x128xf32>
    %57 = tpu.matmul %55, %56, %cst_41 {dimension_numbers = #tpu.dot_dimension_numbers<[1], [0], [0], [1], [0, 0, 1, 1], [], []>} : vector<8x32xbf16>, vector<32x128xbf16>, vector<8x128xf32> -> vector<8x128xf32>
    %58 = arith.truncf %54 : vector<8x32xf32> to vector<8x32xbf16>
    %c0_42 = arith.constant 0 : index
    %c0_43 = arith.constant 0 : index
    %59 = vector.load %arg9[%c0_42, %c0_43] : memref<32x256xbf16, #tpu.memory_space<vmem>>, vector<32x256xbf16>
    %cst_44 = arith.constant dense<0.000000e+00> : vector<8x256xf32>
    %60 = tpu.matmul %58, %59, %cst_44 {dimension_numbers = #tpu.dot_dimension_numbers<[1], [0], [0], [1], [0, 0, 1, 1], [], []>} : vector<8x32xbf16>, vector<32x256xbf16>, vector<8x256xf32> -> vector<8x256xf32>
    %61 = arith.addf %5, %60 : vector<8x256xf32>
    %c0_45 = arith.constant 0 : index
    %c0_46 = arith.constant 0 : index
    %62 = vector.load %arg10[%c0_45, %c0_46] : memref<1x256xf32, #tpu.memory_space<vmem>>, vector<1x256xf32>
    %63 = vector.broadcast %62 : vector<1x256xf32> to vector<8x256xf32>
    %64 = arith.addf %61, %63 : vector<8x256xf32>
    %cst_47 = arith.constant 0.000000e+00 : f32
    %65 = vector.broadcast %cst_47 : f32 to vector<8x256xf32>
    %66 = arith.maximumf %64, %65 : vector<8x256xf32>
    %67 = arith.truncf %66 : vector<8x256xf32> to vector<8x256xbf16>
    %c0_48 = arith.constant 0 : index
    %c0_49 = arith.constant 0 : index
    %68 = vector.load %arg11[%c0_48, %c0_49] : memref<256x128xbf16, #tpu.memory_space<vmem>>, vector<256x128xbf16>
    %cst_50 = arith.constant dense<0.000000e+00> : vector<8x128xf32>
    %69 = tpu.matmul %67, %68, %cst_50 {dimension_numbers = #tpu.dot_dimension_numbers<[1], [0], [0], [1], [0, 0, 1, 1], [], []>} : vector<8x256xbf16>, vector<256x128xbf16>, vector<8x128xf32> -> vector<8x128xf32>
    %c0_51 = arith.constant 0 : index
    %c0_52 = arith.constant 0 : index
    %70 = vector.load %arg12[%c0_51, %c0_52] : memref<1x128xf32, #tpu.memory_space<vmem>>, vector<1x128xf32>
    %71 = vector.broadcast %70 : vector<1x128xf32> to vector<8x128xf32>
    %72 = arith.addf %69, %71 : vector<8x128xf32>
    %cst_53 = arith.constant 0.000000e+00 : f32
    %73 = vector.broadcast %cst_53 : f32 to vector<8x128xf32>
    %74 = arith.maximumf %72, %73 : vector<8x128xf32>
    %75 = arith.truncf %74 : vector<8x128xf32> to vector<8x128xbf16>
    %c0_54 = arith.constant 0 : index
    %c0_55 = arith.constant 0 : index
    %76 = vector.load %arg13[%c0_54, %c0_55] : memref<128x32xbf16, #tpu.memory_space<vmem>>, vector<128x32xbf16>
    %cst_56 = arith.constant dense<0.000000e+00> : vector<8x32xf32>
    %77 = tpu.matmul %75, %76, %cst_56 {dimension_numbers = #tpu.dot_dimension_numbers<[1], [0], [0], [1], [0, 0, 1, 1], [], []>} : vector<8x128xbf16>, vector<128x32xbf16>, vector<8x32xf32> -> vector<8x32xf32>
    %c0_57 = arith.constant 0 : index
    %c0_58 = arith.constant 0 : index
    %78 = vector.load %arg14[%c0_57, %c0_58] : memref<1x32xf32, #tpu.memory_space<vmem>>, vector<1x32xf32>
    %79 = vector.broadcast %78 : vector<1x32xf32> to vector<8x32xf32>
    %80 = arith.addf %77, %79 : vector<8x32xf32>
    %cst_59 = arith.constant 0.000000e+00 : f32
    %81 = vector.broadcast %cst_59 : f32 to vector<8x32xf32>
    %82 = arith.maximumf %80, %81 : vector<8x32xf32>
    %83 = arith.truncf %82 : vector<8x32xf32> to vector<8x32xbf16>
    %c0_60 = arith.constant 0 : index
    %c0_61 = arith.constant 0 : index
    %84 = vector.load %arg16[%c0_60, %c0_61] : memref<32x128xbf16, #tpu.memory_space<vmem>>, vector<32x128xbf16>
    %cst_62 = arith.constant dense<0.000000e+00> : vector<8x128xf32>
    %85 = tpu.matmul %83, %84, %cst_62 {dimension_numbers = #tpu.dot_dimension_numbers<[1], [0], [0], [1], [0, 0, 1, 1], [], []>} : vector<8x32xbf16>, vector<32x128xbf16>, vector<8x128xf32> -> vector<8x128xf32>
    %86 = arith.addf %29, %57 : vector<8x128xf32>
    %87 = arith.addf %86, %85 : vector<8x128xf32>
    %c0_63 = arith.constant 0 : index
    %c0_64 = arith.constant 0 : index
    %88 = vector.load %arg17[%c0_63, %c0_64] : memref<1x128xf32, #tpu.memory_space<vmem>>, vector<1x128xf32>
    %89 = vector.broadcast %88 : vector<1x128xf32> to vector<8x128xf32>
    %90 = arith.addf %87, %89 : vector<8x128xf32>
    %c0_65 = arith.constant 0 : index
    %c0_66 = arith.constant 0 : index
    %91 = vector.load %arg18[%c0_65, %c0_66] : memref<8x128xf32, #tpu.memory_space<vmem>>, vector<8x128xf32>
    tpu.vector_store %arg18[%c0_65, %c0_66], %90 {strides = array<i32>} : memref<8x128xf32, #tpu.memory_space<vmem>>, vector<8x128xf32>,
    return
  }
  func.func @transform_0(%arg0: i32) -> (i32, i32) {
    %c0_i32 = arith.constant 0 : i32
    %c0_i32_0 = arith.constant 0 : i32
    return %arg0, %c0_i32 : i32, i32
  }
  func.func @transform_1(%arg0: i32) -> (i32, i32) {
    %c0_i32 = arith.constant 0 : i32
    %c0_i32_0 = arith.constant 0 : i32
    %c0_i32_1 = arith.constant 0 : i32
    return %c0_i32, %c0_i32_0 : i32, i32
  }
  func.func @transform_2(%arg0: i32) -> (i32, i32) {
    %c0_i32 = arith.constant 0 : i32
    %c0_i32_0 = arith.constant 0 : i32
    %c0_i32_1 = arith.constant 0 : i32
    return %c0_i32, %c0_i32_0 : i32, i32
  }
  func.func @transform_3(%arg0: i32) -> (i32, i32) {
    %c0_i32 = arith.constant 0 : i32
    %c0_i32_0 = arith.constant 0 : i32
    %c0_i32_1 = arith.constant 0 : i32
    return %c0_i32, %c0_i32_0 : i32, i32
  }
  func.func @transform_4(%arg0: i32) -> (i32, i32) {
    %c0_i32 = arith.constant 0 : i32
    %c0_i32_0 = arith.constant 0 : i32
    %c0_i32_1 = arith.constant 0 : i32
    return %c0_i32, %c0_i32_0 : i32, i32
  }
  func.func @transform_5(%arg0: i32) -> (i32, i32) {
    %c0_i32 = arith.constant 0 : i32
    %c0_i32_0 = arith.constant 0 : i32
    %c0_i32_1 = arith.constant 0 : i32
    return %c0_i32, %c0_i32_0 : i32, i32
  }
  func.func @transform_6(%arg0: i32) -> (i32, i32) {
    %c0_i32 = arith.constant 0 : i32
    %c0_i32_0 = arith.constant 0 : i32
    %c0_i32_1 = arith.constant 0 : i32
    return %c0_i32, %c0_i32_0 : i32, i32
  }
  func.func @transform_7(%arg0: i32) -> (i32, i32) {
    %c0_i32 = arith.constant 0 : i32
    %c0_i32_0 = arith.constant 0 : i32
    %c0_i32_1 = arith.constant 0 : i32
    return %c0_i32, %c0_i32_0 : i32, i32
  }
  func.func @transform_8(%arg0: i32) -> (i32, i32) {
    %c0_i32 = arith.constant 0 : i32
    %c0_i32_0 = arith.constant 0 : i32
    %c0_i32_1 = arith.constant 0 : i32
    return %c0_i32, %c0_i32_0 : i32, i32
  }
  func.func @transform_9(%arg0: i32) -> (i32, i32) {
    %c0_i32 = arith.constant 0 : i32
    %c0_i32_0 = arith.constant 0 : i32
    %c0_i32_1 = arith.constant 0 : i32
    return %c0_i32, %c0_i32_0 : i32, i32
  }
  func.func @transform_10(%arg0: i32) -> (i32, i32) {
    %c0_i32 = arith.constant 0 : i32
    %c0_i32_0 = arith.constant 0 : i32
    %c0_i32_1 = arith.constant 0 : i32
    return %c0_i32, %c0_i32_0 : i32, i32
  }
  func.func @transform_11(%arg0: i32) -> (i32, i32) {
    %c0_i32 = arith.constant 0 : i32
    %c0_i32_0 = arith.constant 0 : i32
    %c0_i32_1 = arith.constant 0 : i32
    return %c0_i32, %c0_i32_0 : i32, i32
  }
  func.func @transform_12(%arg0: i32) -> (i32, i32) {
    %c0_i32 = arith.constant 0 : i32
    %c0_i32_0 = arith.constant 0 : i32
    %c0_i32_1 = arith.constant 0 : i32
    return %c0_i32, %c0_i32_0 : i32, i32
  }
  func.func @transform_13(%arg0: i32) -> (i32, i32) {
    %c0_i32 = arith.constant 0 : i32
    %c0_i32_0 = arith.constant 0 : i32
    %c0_i32_1 = arith.constant 0 : i32
    return %c0_i32, %c0_i32_0 : i32, i32
  }
  func.func @transform_14(%arg0: i32) -> (i32, i32) {
    %c0_i32 = arith.constant 0 : i32
    %c0_i32_0 = arith.constant 0 : i32
    %c0_i32_1 = arith.constant 0 : i32
    return %c0_i32, %c0_i32_0 : i32, i32
  }
  func.func @transform_15(%arg0: i32) -> (i32, i32) {
    %c0_i32 = arith.constant 0 : i32
    %c0_i32_0 = arith.constant 0 : i32
    %c0_i32_1 = arith.constant 0 : i32
    return %c0_i32, %c0_i32_0 : i32, i32
  }
  func.func @transform_16(%arg0: i32) -> (i32, i32) {
    %c0_i32 = arith.constant 0 : i32
    %c0_i32_0 = arith.constant 0 : i32
    %c0_i32_1 = arith.constant 0 : i32
    return %c0_i32, %c0_i32_0 : i32, i32
  }
  func.func @transform_17(%arg0: i32) -> (i32, i32) {
    %c0_i32 = arith.constant 0 : i32
    %c0_i32_0 = arith.constant 0 : i32
    return %arg0, %c0_i32 : i32, i32
  }
}

</mosaic_0001>

<llo_original>
// kernel: net_mlp_unrolled.1
$region0: #{net_mlp_unrolled.1}
  #allocation0 [shape = 'u32[]', space=smem, size = 0x4, offset = 0x4, fixed_abs, tag = 'smem constant byte address 0x4 - core index']
  #allocation1 [shape = 'u32[72,128]{1,0:T(1,128)}', space=vmem, size = 0x9000, scoped, tag = 'internal scratch']
  %s0 = inlined_call_operand.hbm [shape: f32[2,521], index: 0, kind: input, shape index: {}]
  %s1 = inlined_call_operand.hbm [shape: bf16[521,512], index: 1, kind: input, shape index: {}]
  %s2 = inlined_call_operand.vmem [shape: f32[1,256], index: 2, kind: input, shape index: {}]
  %s3 = inlined_call_operand.vmem [shape: bf16[256,128], index: 3, kind: input, shape index: {}]
  %s4 = inlined_call_operand.vmem [shape: f32[1,128], index: 4, kind: input, shape index: {}]
  %s5 = inlined_call_operand.vmem [shape: bf16[128,32], index: 5, kind: input, shape index: {}]
  %s6 = inlined_call_operand.hbm [shape: f32[1,32], index: 6, kind: input, shape index: {}]
  %s7 = inlined_call_operand.hbm [shape: bf16[32,128], index: 7, kind: input, shape index: {}]
  %s8 = inlined_call_operand.vmem [shape: bf16[32,256], index: 8, kind: input, shape index: {}]
  %s9 = inlined_call_operand.vmem [shape: f32[1,256], index: 9, kind: input, shape index: {}]
  %s10 = inlined_call_operand.hbm [shape: bf16[256,128], index: 10, kind: input, shape index: {}]
  %s11 = inlined_call_operand.vmem [shape: f32[1,128], index: 11, kind: input, shape index: {}]
  %s12 = inlined_call_operand.vmem [shape: bf16[128,32], index: 12, kind: input, shape index: {}]
  %s13 = inlined_call_operand.vmem [shape: f32[1,32], index: 13, kind: input, shape index: {}]
  %s14 = inlined_call_operand.hbm [shape: bf16[32,128], index: 14, kind: input, shape index: {}]
  %s15 = inlined_call_operand.hbm [shape: bf16[32,128], index: 15, kind: input, shape index: {}]
  %s16 = inlined_call_operand.vmem [shape: f32[1,128], index: 16, kind: input, shape index: {}]
  %s17 = inlined_call_operand.vmem [shape: f32[2,128], index: 17, kind: output, shape index: {}]
  %s18 = sld [smem:[#allocation0]]
  $region136: #{net_mlp_unrolled.1} parent=0
    _
  %s20 = ssub.s32 1, %s18
  %s21 = scalar_select 0, %s20, %s18
  $region1: #{net_mlp_unrolled.1} parent=0
    #allocation2 [shape = 'u8[20480]{0}', space=vmem, size = 0x5000, scoped, tag = 'input window, operand 0, single buffered']
    #allocation3 [shape = 's32[1]{0}', space=sflag, size = 0x4, scoped, tag = 'scoped memory for net_mlp_unrolled.1']
    #allocation4 [shape = 'u8[540672]{0}', space=vmem, size = 0x84000, scoped, tag = 'input window, operand 1, single buffered']
    #allocation5 [shape = 's32[1]{0}', space=sflag, size = 0x4, scoped, tag = 'scoped memory for net_mlp_unrolled.1']
    #allocation6 [shape = 'u8[512]{0}', space=vmem, size = 0x400, scoped, tag = 'input window, operand 6, single buffered']
    #allocation7 [shape = 'u8[8192]{0}', space=vmem, size = 0x2000, scoped, tag = 'input window, operand 7, single buffered']
    #allocation8 [shape = 's32[1]{0}', space=sflag, size = 0x4, scoped, tag = 'scoped memory for net_mlp_unrolled.1']
    #allocation9 [shape = 'u8[65536]{0}', space=vmem, size = 0x10000, scoped, tag = 'input window, operand 10, single buffered']
    #allocation10 [shape = 'u8[8192]{0}', space=vmem, size = 0x2000, scoped, tag = 'input window, operand 14, single buffered']
    #allocation11 [shape = 's32[1]{0}', space=sflag, size = 0x4, scoped, tag = 'scoped memory for net_mlp_unrolled.1']
    #allocation12 [shape = 'u8[8192]{0}', space=vmem, size = 0x2000, scoped, tag = 'input window, operand 15, single buffered']
    #allocation13 [shape = 'u8[4096]{0}', space=vmem, size = 0x1000, scoped, tag = 'output window, operand 0, single buffered']
    %22 = vsyncpa [#allocation3], 0
    %23 = vsyncpa [#allocation5], 0
    %24 = vsyncpa [#allocation8], 0
    %25 = vsyncpa [#allocation11], 0
    // Predicated region
    $region2: #{net_mlp_unrolled.1} parent=1 // pred_check
      _
    $region3: #{net_mlp_unrolled.1} parent=1 // pred_check_branch
      %27 = sbr.rel (0) target = $region5
    $region4: #{net_mlp_unrolled.1} parent=1 // pred_region
      %29 = vsyncadd [#allocation3], 480
      %s30 = sshll.u32 %s0, 4
      %s31 = int_to_ptr.hbm [resolvable:$true] %s30
      %s32 = sshll.u32 [#allocation2], 4
      %s33 = int_to_ptr.vmem [resolvable:$true] %s32
      %38 = dma.hbm_to_vmem [thread:$0]  %s31, 160, %s33, [#allocation3], 160, 160, 10
    $region5: #{net_mlp_unrolled.1} parent=1 // pred_fallthru
      _
    // Predicated region
    $region6: #{net_mlp_unrolled.1} parent=1 // pred_check
      _
    $region7: #{net_mlp_unrolled.1} parent=1 // pred_check_branch
      %40 = sbr.rel (0) target = $region9
    $region8: #{net_mlp_unrolled.1} parent=1 // pred_region
      %42 = vsyncadd [#allocation5], 0
      %s43 = sshll.u32 %s1, 4
      %s44 = int_to_ptr.hbm [resolvable:$true] %s43
      %s45 = sshll.u32 [#allocation4], 4
      %s46 = int_to_ptr.vmem [resolvable:$true] %s45
      %51 = dma.hbm_to_vmem [thread:$0]  %s44, 16896, %s46, [#allocation5], 256, 256, 16
    $region9: #{net_mlp_unrolled.1} parent=1 // pred_fallthru
      _
    // Predicated region
    $region10: #{net_mlp_unrolled.1} parent=1 // pred_check
      _
    $region11: #{net_mlp_unrolled.1} parent=1 // pred_check_branch
      %53 = sbr.rel (0) target = $region13
    $region12: #{net_mlp_unrolled.1} parent=1 // pred_region
      _
    $region13: #{net_mlp_unrolled.1} parent=1 // pred_fallthru
      _
    // Predicated region
    $region14: #{net_mlp_unrolled.1} parent=1 // pred_check
      _
    $region15: #{net_mlp_unrolled.1} parent=1 // pred_check_branch
      %55 = sbr.rel (0) target = $region17
    $region16: #{net_mlp_unrolled.1} parent=1 // pred_region
      _
    $region17: #{net_mlp_unrolled.1} parent=1 // pred_fallthru
      _
    // Predicated region
    $region18: #{net_mlp_unrolled.1} parent=1 // pred_check
      _
    $region19: #{net_mlp_unrolled.1} parent=1 // pred_check_branch
      %57 = sbr.rel (0) target = $region21
    $region20: #{net_mlp_unrolled.1} parent=1 // pred_region
      _
    $region21: #{net_mlp_unrolled.1} parent=1 // pred_fallthru
      _
    // Predicated region
    $region22: #{net_mlp_unrolled.1} parent=1 // pred_check
      _
    $region23: #{net_mlp_unrolled.1} parent=1 // pred_check_branch
      %59 = sbr.rel (0) target = $region25
    $region24: #{net_mlp_unrolled.1} parent=1 // pred_region
      _
    $region25: #{net_mlp_unrolled.1} parent=1 // pred_fallthru
      _
    // Predicated region
    $region26: #{net_mlp_unrolled.1} parent=1 // pred_check
      _
    $region27: #{net_mlp_unrolled.1} parent=1 // pred_check_branch
      %61 = sbr.rel (0) target = $region29
    $region28: #{net_mlp_unrolled.1} parent=1 // pred_region
      %63 = vsyncadd [#allocation5], 0
      %s65 = sshll.u32 %s6, 4
      %s66 = int_to_ptr.hbm [resolvable:$true] %s65
      %s67 = sshll.u32 [#allocation6], 4
      %s68 = int_to_ptr.vmem [resolvable:$true] %s67
      %70 = dma.hbm_to_vmem [thread:$0]  %s66, 16, %s68, [#allocation5]
    $region29: #{net_mlp_unrolled.1} parent=1 // pred_fallthru
      _
    // Predicated region
    $region30: #{net_mlp_unrolled.1} parent=1 // pred_check
      _
    $region31: #{net_mlp_unrolled.1} parent=1 // pred_check_branch
      %72 = sbr.rel (0) target = $region33
    $region32: #{net_mlp_unrolled.1} parent=1 // pred_region
      %74 = vsyncadd [#allocation8], 0
      %s75 = sshll.u32 %s7, 4
      %s76 = int_to_ptr.hbm [resolvable:$true] %s75
      %s77 = sshll.u32 [#allocation7], 4
      %s78 = int_to_ptr.vmem [resolvable:$true] %s77
      %83 = dma.hbm_to_vmem [thread:$0]  %s76, 256, %s78, [#allocation8], 64, 64, 4
    $region33: #{net_mlp_unrolled.1} parent=1 // pred_fallthru
      _
    // Predicated region
    $region34: #{net_mlp_unrolled.1} parent=1 // pred_check
      _
    $region35: #{net_mlp_unrolled.1} parent=1 // pred_check_branch
      %85 = sbr.rel (0) target = $region37
    $region36: #{net_mlp_unrolled.1} parent=1 // pred_region
      _
    $region37: #{net_mlp_unrolled.1} parent=1 // pred_fallthru
      _
    // Predicated region
    $region38: #{net_mlp_unrolled.1} parent=1 // pred_check
      _
    $region39: #{net_mlp_unrolled.1} parent=1 // pred_check_branch
      %87 = sbr.rel (0) target = $region41
    $region40: #{net_mlp_unrolled.1} parent=1 // pred_region
      _
    $region41: #{net_mlp_unrolled.1} parent=1 // pred_fallthru
      _
    // Predicated region
    $region42: #{net_mlp_unrolled.1} parent=1 // pred_check
      _
    $region43: #{net_mlp_unrolled.1} parent=1 // pred_check_branch
      %89 = sbr.rel (0) target = $region45
    $region44: #{net_mlp_unrolled.1} parent=1 // pred_region
      %91 = vsyncadd [#allocation8], 0
      %s92 = sshll.u32 %s10, 4
      %s93 = int_to_ptr.hbm [resolvable:$true] %s92
      %s94 = sshll.u32 [#allocation9], 4
      %s95 = int_to_ptr.vmem [resolvable:$true] %s94
      %100 = dma.hbm_to_vmem [thread:$0]  %s93, 2048, %s95, [#allocation8], 64, 64, 4
    $region45: #{net_mlp_unrolled.1} parent=1 // pred_fallthru
      _
    // Predicated region
    $region46: #{net_mlp_unrolled.1} parent=1 // pred_check
      _
    $region47: #{net_mlp_unrolled.1} parent=1 // pred_check_branch
      %102 = sbr.rel (0) target = $region49
    $region48: #{net_mlp_unrolled.1} parent=1 // pred_region
      _
    $region49: #{net_mlp_unrolled.1} parent=1 // pred_fallthru
      _
    // Predicated region
    $region50: #{net_mlp_unrolled.1} parent=1 // pred_check
      _
    $region51: #{net_mlp_unrolled.1} parent=1 // pred_check_branch
      %104 = sbr.rel (0) target = $region53
    $region52: #{net_mlp_unrolled.1} parent=1 // pred_region
      _
    $region53: #{net_mlp_unrolled.1} parent=1 // pred_fallthru
      _
    // Predicated region
    $region54: #{net_mlp_unrolled.1} parent=1 // pred_check
      _
    $region55: #{net_mlp_unrolled.1} parent=1 // pred_check_branch
      %106 = sbr.rel (0) target = $region57
    $region56: #{net_mlp_unrolled.1} parent=1 // pred_region
      _
    $region57: #{net_mlp_unrolled.1} parent=1 // pred_fallthru
      _
    // Predicated region
    $region58: #{net_mlp_unrolled.1} parent=1 // pred_check
      _
    $region59: #{net_mlp_unrolled.1} parent=1 // pred_check_branch
      %108 = sbr.rel (0) target = $region61
    $region60: #{net_mlp_unrolled.1} parent=1 // pred_region
      %110 = vsyncadd [#allocation11], 0
      %s111 = sshll.u32 %s14, 4
      %s112 = int_to_ptr.hbm [resolvable:$true] %s111
      %s113 = sshll.u32 [#allocation10], 4
      %s114 = int_to_ptr.vmem [resolvable:$true] %s113
      %119 = dma.hbm_to_vmem [thread:$0]  %s112, 256, %s114, [#allocation11], 64, 64, 4
    $region61: #{net_mlp_unrolled.1} parent=1 // pred_fallthru
      _
    // Predicated region
    $region62: #{net_mlp_unrolled.1} parent=1 // pred_check
      _
    $region63: #{net_mlp_unrolled.1} parent=1 // pred_check_branch
      %121 = sbr.rel (0) target = $region65
    $region64: #{net_mlp_unrolled.1} parent=1 // pred_region
      %123 = vsyncadd [#allocation11], 0
      %s124 = sshll.u32 %s15, 4
      %s125 = int_to_ptr.hbm [resolvable:$true] %s124
      %s126 = sshll.u32 [#allocation12], 4
      %s127 = int_to_ptr.vmem [resolvable:$true] %s126
      %132 = dma.hbm_to_vmem [thread:$0]  %s125, 256, %s127, [#allocation11], 64, 64, 4
    $region65: #{net_mlp_unrolled.1} parent=1 // pred_fallthru
      _
    // Predicated region
    $region66: #{net_mlp_unrolled.1} parent=1 // pred_check
      _
    $region67: #{net_mlp_unrolled.1} parent=1 // pred_check_branch
      %134 = sbr.rel (0) target = $region69
    $region68: #{net_mlp_unrolled.1} parent=1 // pred_region
      _
    $region69: #{net_mlp_unrolled.1} parent=1 // pred_fallthru
      _
    // Predicated region
    $region70: #{net_mlp_unrolled.1} parent=1 // pred_check
      _
    $region71: #{net_mlp_unrolled.1} parent=1 // pred_check_branch
      %136 = sbr.rel (0) target = $region73
    $region72: #{net_mlp_unrolled.1} parent=1 // pred_region
      %138 = dma.done [#allocation3], 640
    $region73: #{net_mlp_unrolled.1} parent=1 // pred_fallthru
      _
    // Predicated region
    $region74: #{net_mlp_unrolled.1} parent=1 // pred_check
      _
    $region75: #{net_mlp_unrolled.1} parent=1 // pred_check_branch
      %140 = sbr.rel (0) target = $region77
    $region76: #{net_mlp_unrolled.1} parent=1 // pred_region
      %142 = dma.done [#allocation5], 16896
    $region77: #{net_mlp_unrolled.1} parent=1 // pred_fallthru
      _
    // Predicated region
    $region78: #{net_mlp_unrolled.1} parent=1 // pred_check
      _
    $region79: #{net_mlp_unrolled.1} parent=1 // pred_check_branch
      %144 = sbr.rel (0) target = $region81
    $region80: #{net_mlp_unrolled.1} parent=1 // pred_region
      %146 = dma.done [#allocation5], 16
    $region81: #{net_mlp_unrolled.1} parent=1 // pred_fallthru
      _
    // Predicated region
    $region82: #{net_mlp_unrolled.1} parent=1 // pred_check
      _
    $region83: #{net_mlp_unrolled.1} parent=1 // pred_check_branch
      %148 = sbr.rel (0) target = $region85
    $region84: #{net_mlp_unrolled.1} parent=1 // pred_region
      %150 = dma.done [#allocation8], 256
    $region85: #{net_mlp_unrolled.1} parent=1 // pred_fallthru
      _
    // Predicated region
    $region86: #{net_mlp_unrolled.1} parent=1 // pred_check
      _
    $region87: #{net_mlp_unrolled.1} parent=1 // pred_check_branch
      %152 = sbr.rel (0) target = $region89
    $region88: #{net_mlp_unrolled.1} parent=1 // pred_region
      %154 = dma.done [#allocation8], 2048
    $region89: #{net_mlp_unrolled.1} parent=1 // pred_fallthru
      _
    // Predicated region
    $region90: #{net_mlp_unrolled.1} parent=1 // pred_check
      _
    $region91: #{net_mlp_unrolled.1} parent=1 // pred_check_branch
      %156 = sbr.rel (0) target = $region93
    $region92: #{net_mlp_unrolled.1} parent=1 // pred_region
      %158 = dma.done [#allocation11], 256
    $region93: #{net_mlp_unrolled.1} parent=1 // pred_fallthru
      _
    // Predicated region
    $region94: #{net_mlp_unrolled.1} parent=1 // pred_check
      _
    $region95: #{net_mlp_unrolled.1} parent=1 // pred_check_branch
      %160 = sbr.rel (0) target = $region97
    $region96: #{net_mlp_unrolled.1} parent=1 // pred_region
      %162 = dma.done [#allocation11], 256
    $region97: #{net_mlp_unrolled.1} parent=1 // pred_fallthru
      _
    %v164 = vld [vmem:[#allocation2] sm:$0xff]
    %v165 = vld [vmem:[#allocation2 + $0x8] sm:$0x3]
    %v166 = vld [vmem:[#allocation2 + $0xa] sm:$0xff]
    %v167 = vld [vmem:[#allocation2 + $0x12] sm:$0x3]
    %v168 = vld [vmem:[#allocation2 + $0x14] sm:$0xff]
    %v169 = vld [vmem:[#allocation2 + $0x1c] sm:$0x3]
    %v170 = vld [vmem:[#allocation2 + $0x1e] sm:$0xff]
    %v171 = vld [vmem:[#allocation2 + $0x26] sm:$0x3]
    %180 = vst [vmem:[#allocation1] ss:$4 sm:$0xff] %v164
    %s181 = scalar_lea.vmem [#allocation1], 1
    %182 = vst [vmem:[%s181] ss:$4 sm:$0xff] %v166
    %s183 = scalar_lea.vmem [#allocation1], 2
    %184 = vst [vmem:[%s183] ss:$4 sm:$0xff] %v168
    %s185 = scalar_lea.vmem [#allocation1], 3
    %186 = vst [vmem:[%s185] ss:$4 sm:$0xff] %v170
    %s187 = scalar_lea.vmem [#allocation1], 32
    %188 = vst [vmem:[%s187] ss:$4 sm:$0xff] %v165
    %s189 = scalar_lea.vmem [#allocation1], 33
    %190 = vst [vmem:[%s189] ss:$4 sm:$0xff] %v167
    %s191 = scalar_lea.vmem [#allocation1], 34
    %192 = vst [vmem:[%s191] ss:$4 sm:$0xff] %v169
    %s193 = scalar_lea.vmem [#allocation1], 35
    %194 = vst [vmem:[%s193] ss:$4 sm:$0xff] %v171
    %v195 = vld.sshfl [vmem:[#allocation1] sm:$0xff pattern:$0x73625140]
    %v196 = vld.sshfl [vmem:[#allocation1 + $0x8] sm:$0xff pattern:$0x73625140]
    %v197 = vld.sshfl [vmem:[#allocation1 + $0x10] sm:$0xff pattern:$0x73625140]
    %v198 = vld.sshfl [vmem:[#allocation1 + $0x18] sm:$0xff pattern:$0x73625140]
    %v199 = vld.sshfl [vmem:[#allocation1 + $0x20] sm:$0xff pattern:$0x73625140]
    %v205 = vpack.c.bf16 %v195, %v195
    %v206 = vpack.c.bf16 %v196, %v196
    %v207 = vpack.c.bf16 %v197, %v197
    %v208 = vpack.c.bf16 %v198, %v198
    %v209 = vpack.c.bf16 %v199, %v199
    %v210 = vld [vmem:[#allocation4] sm:$0xff]
    %v211 = vld [vmem:[#allocation4 + $0x8] sm:$0xff]
    %v212 = vld [vmem:[#allocation4 + $0x10] sm:$0xff]
    %v213 = vld [vmem:[#allocation4 + $0x18] sm:$0xff]
    %v214 = vld [vmem:[#allocation4 + $0x20] sm:$0xff]
    %v215 = vld [vmem:[#allocation4 + $0x28] sm:$0xff]
    %v216 = vld [vmem:[#allocation4 + $0x30] sm:$0xff]
    %v217 = vld [vmem:[#allocation4 + $0x38] sm:$0xff]
    %v218 = vld [vmem:[#allocation4 + $0x40] sm:$0xff]
    %v219 = vld [vmem:[#allocation4 + $0x48] sm:$0xff]
    %v220 = vld [vmem:[#allocation4 + $0x50] sm:$0xff]
    %v221 = vld [vmem:[#allocation4 + $0x58] sm:$0xff]
    %v222 = vld [vmem:[#allocation4 + $0x60] sm:$0xff]
    %v223 = vld [vmem:[#allocation4 + $0x68] sm:$0xff]
    %v224 = vld [vmem:[#allocation4 + $0x70] sm:$0xff]
    %v225 = vld [vmem:[#allocation4 + $0x78] sm:$0xff]
    %v226 = vld [vmem:[#allocation4 + $0x80] sm:$0xff]
    %v227 = vld [vmem:[#allocation4 + $0x88] sm:$0xff]
    %v228 = vld [vmem:[#allocation4 + $0x90] sm:$0xff]
    %v229 = vld [vmem:[#allocation4 + $0x98] sm:$0xff]
    %v230 = vld [vmem:[#allocation4 + $0xa0] sm:$0xff]
    %v231 = vld [vmem:[#allocation4 + $0xa8] sm:$0xff]
    %v232 = vld [vmem:[#allocation4 + $0xb0] sm:$0xff]
    %v233 = vld [vmem:[#allocation4 + $0xb8] sm:$0xff]
    %v234 = vld [vmem:[#allocation4 + $0xc0] sm:$0xff]
    %v235 = vld [vmem:[#allocation4 + $0xc8] sm:$0xff]
    %v236 = vld [vmem:[#allocation4 + $0xd0] sm:$0xff]
    %v237 = vld [vmem:[#allocation4 + $0xd8] sm:$0xff]
    %v238 = vld [vmem:[#allocation4 + $0xe0] sm:$0xff]
    %v239 = vld [vmem:[#allocation4 + $0xe8] sm:$0xff]
    %v240 = vld [vmem:[#allocation4 + $0xf0] sm:$0xff]
    %v241 = vld [vmem:[#allocation4 + $0xf8] sm:$0xff]
    %v242 = vld [vmem:[#allocation4 + $0x100] sm:$0xff]
    %v243 = vld [vmem:[#allocation4 + $0x108] sm:$0xff]
    %v244 = vld [vmem:[#allocation4 + $0x110] sm:$0xff]
    %v245 = vld [vmem:[#allocation4 + $0x118] sm:$0xff]
    %v246 = vld [vmem:[#allocation4 + $0x120] sm:$0xff]
    %v247 = vld [vmem:[#allocation4 + $0x128] sm:$0xff]
    %v248 = vld [vmem:[#allocation4 + $0x130] sm:$0xff]
    %v249 = vld [vmem:[#allocation4 + $0x138] sm:$0xff]
    %v250 = vld [vmem:[#allocation4 + $0x140] sm:$0xff]
    %v251 = vld [vmem:[#allocation4 + $0x148] sm:$0xff]
    %v252 = vld [vmem:[#allocation4 + $0x150] sm:$0xff]
    %v253 = vld [vmem:[#allocation4 + $0x158] sm:$0xff]
    %v254 = vld [vmem:[#allocation4 + $0x160] sm:$0xff]
    %v255 = vld [vmem:[#allocation4 + $0x168] sm:$0xff]
    %v256 = vld [vmem:[#allocation4 + $0x170] sm:$0xff]
    %v257 = vld [vmem:[#allocation4 + $0x178] sm:$0xff]
    %v258 = vld [vmem:[#allocation4 + $0x180] sm:$0xff]
    %v259 = vld [vmem:[#allocation4 + $0x188] sm:$0xff]
    %v260 = vld [vmem:[#allocation4 + $0x190] sm:$0xff]
    %v261 = vld [vmem:[#allocation4 + $0x198] sm:$0xff]
    %v262 = vld [vmem:[#allocation4 + $0x1a0] sm:$0xff]
    %v263 = vld [vmem:[#allocation4 + $0x1a8] sm:$0xff]
    %v264 = vld [vmem:[#allocation4 + $0x1b0] sm:$0xff]
    %v265 = vld [vmem:[#allocation4 + $0x1b8] sm:$0xff]
    %v266 = vld [vmem:[#allocation4 + $0x1c0] sm:$0xff]
    %v267 = vld [vmem:[#allocation4 + $0x1c8] sm:$0xff]
    %v268 = vld [vmem:[#allocation4 + $0x1d0] sm:$0xff]
    %v269 = vld [vmem:[#allocation4 + $0x1d8] sm:$0xff]
    %v270 = vld [vmem:[#allocation4 + $0x1e0] sm:$0xff]
    %v271 = vld [vmem:[#allocation4 + $0x1e8] sm:$0xff]
    %v272 = vld [vmem:[#allocation4 + $0x1f0] sm:$0xff]
    %v273 = vld [vmem:[#allocation4 + $0x1f8] sm:$0xff]
    %v274 = vld [vmem:[#allocation4 + $0x200] sm:$0xff]
    %v275 = vld [vmem:[#allocation4 + $0x208] sm:$0xff]
    %v276 = vld [vmem:[#allocation4 + $0x210] sm:$0xff]
    %v277 = vld [vmem:[#allocation4 + $0x218] sm:$0xff]
    %v278 = vld [vmem:[#allocation4 + $0x220] sm:$0xff]
    %v279 = vld [vmem:[#allocation4 + $0x228] sm:$0xff]
    %v280 = vld [vmem:[#allocation4 + $0x230] sm:$0xff]
    %v281 = vld [vmem:[#allocation4 + $0x238] sm:$0xff]
    %v282 = vld [vmem:[#allocation4 + $0x240] sm:$0xff]
    %v283 = vld [vmem:[#allocation4 + $0x248] sm:$0xff]
    %v284 = vld [vmem:[#allocation4 + $0x250] sm:$0xff]
    %v285 = vld [vmem:[#allocation4 + $0x258] sm:$0xff]
    %v286 = vld [vmem:[#allocation4 + $0x260] sm:$0xff]
    %v287 = vld [vmem:[#allocation4 + $0x268] sm:$0xff]
    %v288 = vld [vmem:[#allocation4 + $0x270] sm:$0xff]
    %v289 = vld [vmem:[#allocation4 + $0x278] sm:$0xff]
    %v290 = vld [vmem:[#allocation4 + $0x280] sm:$0xff]
    %v291 = vld [vmem:[#allocation4 + $0x288] sm:$0xff]
    %v292 = vld [vmem:[#allocation4 + $0x290] sm:$0xff]
    %v293 = vld [vmem:[#allocation4 + $0x298] sm:$0xff]
    %v294 = vld [vmem:[#allocation4 + $0x2a0] sm:$0xff]
    %v295 = vld [vmem:[#allocation4 + $0x2a8] sm:$0xff]
    %v296 = vld [vmem:[#allocation4 + $0x2b0] sm:$0xff]
    %v297 = vld [vmem:[#allocation4 + $0x2b8] sm:$0xff]
    %v298 = vld [vmem:[#allocation4 + $0x2c0] sm:$0xff]
    %v299 = vld [vmem:[#allocation4 + $0x2c8] sm:$0xff]
    %v300 = vld [vmem:[#allocation4 + $0x2d0] sm:$0xff]
    %v301 = vld [vmem:[#allocation4 + $0x2d8] sm:$0xff]
    %v302 = vld [vmem:[#allocation4 + $0x2e0] sm:$0xff]
    %v303 = vld [vmem:[#allocation4 + $0x2e8] sm:$0xff]
    %v304 = vld [vmem:[#allocation4 + $0x2f0] sm:$0xff]
    %v305 = vld [vmem:[#allocation4 + $0x2f8] sm:$0xff]
    %v306 = vld [vmem:[#allocation4 + $0x300] sm:$0xff]
    %v307 = vld [vmem:[#allocation4 + $0x308] sm:$0xff]
    %v308 = vld [vmem:[#allocation4 + $0x310] sm:$0xff]
    %v309 = vld [vmem:[#allocation4 + $0x318] sm:$0xff]
    %v310 = vld [vmem:[#allocation4 + $0x320] sm:$0xff]
    %v311 = vld [vmem:[#allocation4 + $0x328] sm:$0xff]
    %v312 = vld [vmem:[#allocation4 + $0x330] sm:$0xff]
    %v313 = vld [vmem:[#allocation4 + $0x338] sm:$0xff]
    %v314 = vld [vmem:[#allocation4 + $0x340] sm:$0xff]
    %v315 = vld [vmem:[#allocation4 + $0x348] sm:$0xff]
    %v316 = vld [vmem:[#allocation4 + $0x350] sm:$0xff]
    %v317 = vld [vmem:[#allocation4 + $0x358] sm:$0xff]
    %v318 = vld [vmem:[#allocation4 + $0x360] sm:$0xff]
    %v319 = vld [vmem:[#allocation4 + $0x368] sm:$0xff]
    %v320 = vld [vmem:[#allocation4 + $0x370] sm:$0xff]
    %v321 = vld [vmem:[#allocation4 + $0x378] sm:$0xff]
    %v322 = vld [vmem:[#allocation4 + $0x380] sm:$0xff]
    %v323 = vld [vmem:[#allocation4 + $0x388] sm:$0xff]
    %v324 = vld [vmem:[#allocation4 + $0x390] sm:$0xff]
    %v325 = vld [vmem:[#allocation4 + $0x398] sm:$0xff]
    %v326 = vld [vmem:[#allocation4 + $0x3a0] sm:$0xff]
    %v327 = vld [vmem:[#allocation4 + $0x3a8] sm:$0xff]
    %v328 = vld [vmem:[#allocation4 + $0x3b0] sm:$0xff]
    %v329 = vld [vmem:[#allocation4 + $0x3b8] sm:$0xff]
    %v330 = vld [vmem:[#allocation4 + $0x3c0] sm:$0xff]
    %v331 = vld [vmem:[#allocation4 + $0x3c8] sm:$0xff]
    %v332 = vld [vmem:[#allocation4 + $0x3d0] sm:$0xff]
    %v333 = vld [vmem:[#allocation4 + $0x3d8] sm:$0xff]
    %v334 = vld [vmem:[#allocation4 + $0x3e0] sm:$0xff]
    %v335 = vld [vmem:[#allocation4 + $0x3e8] sm:$0xff]
    %v336 = vld [vmem:[#allocation4 + $0x3f0] sm:$0xff]
    %v337 = vld [vmem:[#allocation4 + $0x3f8] sm:$0xff]
    %v338 = vld [vmem:[#allocation4 + $0x400] sm:$0xff]
    %v339 = vld [vmem:[#allocation4 + $0x408] sm:$0xff]
    %v340 = vld [vmem:[#allocation4 + $0x410] sm:$0x11]
    %v341 = vld [vmem:[#allocation4 + $0x418] sm:$0x11]
    %v474 = vunpack.c.l.b16 %v210
    %v475 = vunpack.c.h.b16 %v210
    %v476 = vunpack.c.l.b16 %v211
    %v477 = vunpack.c.h.b16 %v211
    %v478 = vunpack.c.l.b16 %v212
    %v479 = vunpack.c.h.b16 %v212
    %v480 = vunpack.c.l.b16 %v213
    %v481 = vunpack.c.h.b16 %v213
    %v482 = vunpack.c.l.b16 %v214
    %v483 = vunpack.c.h.b16 %v214
    %v484 = vunpack.c.l.b16 %v215
    %v485 = vunpack.c.h.b16 %v215
    %v486 = vunpack.c.l.b16 %v216
    %v487 = vunpack.c.h.b16 %v216
    %v488 = vunpack.c.l.b16 %v217
    %v489 = vunpack.c.h.b16 %v217
    %v490 = vunpack.c.l.b16 %v218
    %v491 = vunpack.c.h.b16 %v218
    %v492 = vunpack.c.l.b16 %v219
    %v493 = vunpack.c.h.b16 %v219
    %v494 = vunpack.c.l.b16 %v220
    %v495 = vunpack.c.h.b16 %v220
    %v496 = vunpack.c.l.b16 %v221
    %v497 = vunpack.c.h.b16 %v221
    %v498 = vunpack.c.l.b16 %v222
    %v499 = vunpack.c.h.b16 %v222
    %v500 = vunpack.c.l.b16 %v223
    %v501 = vunpack.c.h.b16 %v223
    %v502 = vunpack.c.l.b16 %v224
    %v503 = vunpack.c.h.b16 %v224
    %v504 = vunpack.c.l.b16 %v225
    %v505 = vunpack.c.h.b16 %v225
    %v506 = vunpack.c.l.b16 %v226
    %v507 = vunpack.c.h.b16 %v226
    %v508 = vunpack.c.l.b16 %v227
    %v509 = vunpack.c.h.b16 %v227
    %v510 = vunpack.c.l.b16 %v228
    %v511 = vunpack.c.h.b16 %v228
    %v512 = vunpack.c.l.b16 %v229
    %v513 = vunpack.c.h.b16 %v229
    %v514 = vunpack.c.l.b16 %v230
    %v515 = vunpack.c.h.b16 %v230
    %v516 = vunpack.c.l.b16 %v231
    %v517 = vunpack.c.h.b16 %v231
    %v518 = vunpack.c.l.b16 %v232
    %v519 = vunpack.c.h.b16 %v232
    %v520 = vunpack.c.l.b16 %v233
    %v521 = vunpack.c.h.b16 %v233
    %v522 = vunpack.c.l.b16 %v234
    %v523 = vunpack.c.h.b16 %v234
    %v524 = vunpack.c.l.b16 %v235
    %v525 = vunpack.c.h.b16 %v235
    %v526 = vunpack.c.l.b16 %v236
    %v527 = vunpack.c.h.b16 %v236
    %v528 = vunpack.c.l.b16 %v237
    %v529 = vunpack.c.h.b16 %v237
    %v530 = vunpack.c.l.b16 %v238
    %v531 = vunpack.c.h.b16 %v238
    %v532 = vunpack.c.l.b16 %v239
    %v533 = vunpack.c.h.b16 %v239
    %v534 = vunpack.c.l.b16 %v240
    %v535 = vunpack.c.h.b16 %v240
    %v536 = vunpack.c.l.b16 %v241
    %v537 = vunpack.c.h.b16 %v241
    %v538 = vunpack.c.l.b16 %v242
    %v539 = vunpack.c.h.b16 %v242
    %v540 = vunpack.c.l.b16 %v243
    %v541 = vunpack.c.h.b16 %v243
    %v542 = vunpack.c.l.b16 %v244
    %v543 = vunpack.c.h.b16 %v244
    %v544 = vunpack.c.l.b16 %v245
    %v545 = vunpack.c.h.b16 %v245
    %v546 = vunpack.c.l.b16 %v246
    %v547 = vunpack.c.h.b16 %v246
    %v548 = vunpack.c.l.b16 %v247
    %v549 = vunpack.c.h.b16 %v247
    %v550 = vunpack.c.l.b16 %v248
    %v551 = vunpack.c.h.b16 %v248
    %v552 = vunpack.c.l.b16 %v249
    %v553 = vunpack.c.h.b16 %v249
    %v554 = vunpack.c.l.b16 %v250
    %v555 = vunpack.c.h.b16 %v250
    %v556 = vunpack.c.l.b16 %v251
    %v557 = vunpack.c.h.b16 %v251
    %v558 = vunpack.c.l.b16 %v252
    %v559 = vunpack.c.h.b16 %v252
    %v560 = vunpack.c.l.b16 %v253
    %v561 = vunpack.c.h.b16 %v253
    %v562 = vunpack.c.l.b16 %v254
    %v563 = vunpack.c.h.b16 %v254
    %v564 = vunpack.c.l.b16 %v255
    %v565 = vunpack.c.h.b16 %v255
    %v566 = vunpack.c.l.b16 %v256
    %v567 = vunpack.c.h.b16 %v256
    %v568 = vunpack.c.l.b16 %v257
    %v569 = vunpack.c.h.b16 %v257
    %v570 = vunpack.c.l.b16 %v258
    %v571 = vunpack.c.h.b16 %v258
    %v572 = vunpack.c.l.b16 %v259
    %v573 = vunpack.c.h.b16 %v259
    %v574 = vunpack.c.l.b16 %v260
    %v575 = vunpack.c.h.b16 %v260
    %v576 = vunpack.c.l.b16 %v261
    %v577 = vunpack.c.h.b16 %v261
    %v578 = vunpack.c.l.b16 %v262
    %v579 = vunpack.c.h.b16 %v262
    %v580 = vunpack.c.l.b16 %v263
    %v581 = vunpack.c.h.b16 %v263
    %v582 = vunpack.c.l.b16 %v264
    %v583 = vunpack.c.h.b16 %v264
    %v584 = vunpack.c.l.b16 %v265
    %v585 = vunpack.c.h.b16 %v265
    %v586 = vunpack.c.l.b16 %v266
    %v587 = vunpack.c.h.b16 %v266
    %v588 = vunpack.c.l.b16 %v267
    %v589 = vunpack.c.h.b16 %v267
    %v590 = vunpack.c.l.b16 %v268
    %v591 = vunpack.c.h.b16 %v268
    %v592 = vunpack.c.l.b16 %v269
    %v593 = vunpack.c.h.b16 %v269
    %v594 = vunpack.c.l.b16 %v270
    %v595 = vunpack.c.h.b16 %v270
    %v596 = vunpack.c.l.b16 %v271
    %v597 = vunpack.c.h.b16 %v271
    %v598 = vunpack.c.l.b16 %v272
    %v599 = vunpack.c.h.b16 %v272
    %v600 = vunpack.c.l.b16 %v273
    %v601 = vunpack.c.h.b16 %v273
    %v602 = vunpack.c.l.b16 %v274
    %v603 = vunpack.c.h.b16 %v274
    %v604 = vunpack.c.l.b16 %v275
    %v605 = vunpack.c.h.b16 %v275
    %v606 = vunpack.c.l.b16 %v276
    %v607 = vunpack.c.h.b16 %v276
    %v608 = vunpack.c.l.b16 %v277
    %v609 = vunpack.c.h.b16 %v277
    %v610 = vunpack.c.l.b16 %v278
    %v611 = vunpack.c.h.b16 %v278
    %v612 = vunpack.c.l.b16 %v279
    %v613 = vunpack.c.h.b16 %v279
    %v614 = vunpack.c.l.b16 %v280
    %v615 = vunpack.c.h.b16 %v280
    %v616 = vunpack.c.l.b16 %v281
    %v617 = vunpack.c.h.b16 %v281
    %v618 = vunpack.c.l.b16 %v282
    %v619 = vunpack.c.h.b16 %v282
    %v620 = vunpack.c.l.b16 %v283
    %v621 = vunpack.c.h.b16 %v283
    %v622 = vunpack.c.l.b16 %v284
    %v623 = vunpack.c.h.b16 %v284
    %v624 = vunpack.c.l.b16 %v285
    %v625 = vunpack.c.h.b16 %v285
    %v626 = vunpack.c.l.b16 %v286
    %v627 = vunpack.c.h.b16 %v286
    %v628 = vunpack.c.l.b16 %v287
    %v629 = vunpack.c.h.b16 %v287
    %v630 = vunpack.c.l.b16 %v288
    %v631 = vunpack.c.h.b16 %v288
    %v632 = vunpack.c.l.b16 %v289
    %v633 = vunpack.c.h.b16 %v289
    %v634 = vunpack.c.l.b16 %v290
    %v635 = vunpack.c.h.b16 %v290
    %v636 = vunpack.c.l.b16 %v291
    %v637 = vunpack.c.h.b16 %v291
    %v638 = vunpack.c.l.b16 %v292
    %v639 = vunpack.c.h.b16 %v292
    %v640 = vunpack.c.l.b16 %v293
    %v641 = vunpack.c.h.b16 %v293
    %v642 = vunpack.c.l.b16 %v294
    %v643 = vunpack.c.h.b16 %v294
    %v644 = vunpack.c.l.b16 %v295
    %v645 = vunpack.c.h.b16 %v295
    %v646 = vunpack.c.l.b16 %v296
    %v647 = vunpack.c.h.b16 %v296
    %v648 = vunpack.c.l.b16 %v297
    %v649 = vunpack.c.h.b16 %v297
    %v650 = vunpack.c.l.b16 %v298
    %v651 = vunpack.c.h.b16 %v298
    %v652 = vunpack.c.l.b16 %v299
    %v653 = vunpack.c.h.b16 %v299
    %v654 = vunpack.c.l.b16 %v300
    %v655 = vunpack.c.h.b16 %v300
    %v656 = vunpack.c.l.b16 %v301
    %v657 = vunpack.c.h.b16 %v301
    %v658 = vunpack.c.l.b16 %v302
    %v659 = vunpack.c.h.b16 %v302
    %v660 = vunpack.c.l.b16 %v303
    %v661 = vunpack.c.h.b16 %v303
    %v662 = vunpack.c.l.b16 %v304
    %v663 = vunpack.c.h.b16 %v304
    %v664 = vunpack.c.l.b16 %v305
    %v665 = vunpack.c.h.b16 %v305
    %v666 = vunpack.c.l.b16 %v306
    %v667 = vunpack.c.h.b16 %v306
    %v668 = vunpack.c.l.b16 %v307
    %v669 = vunpack.c.h.b16 %v307
    %v670 = vunpack.c.l.b16 %v308
    %v671 = vunpack.c.h.b16 %v308
    %v672 = vunpack.c.l.b16 %v309
    %v673 = vunpack.c.h.b16 %v309
    %v674 = vunpack.c.l.b16 %v310
    %v675 = vunpack.c.h.b16 %v310
    %v676 = vunpack.c.l.b16 %v311
    %v677 = vunpack.c.h.b16 %v311
    %v678 = vunpack.c.l.b16 %v312
    %v679 = vunpack.c.h.b16 %v312
    %v680 = vunpack.c.l.b16 %v313
    %v681 = vunpack.c.h.b16 %v313
    %v682 = vunpack.c.l.b16 %v314
    %v683 = vunpack.c.h.b16 %v314
    %v684 = vunpack.c.l.b16 %v315
    %v685 = vunpack.c.h.b16 %v315
    %v686 = vunpack.c.l.b16 %v316
    %v687 = vunpack.c.h.b16 %v316
    %v688 = vunpack.c.l.b16 %v317
    %v689 = vunpack.c.h.b16 %v317
    %v690 = vunpack.c.l.b16 %v318
    %v691 = vunpack.c.h.b16 %v318
    %v692 = vunpack.c.l.b16 %v319
    %v693 = vunpack.c.h.b16 %v319
    %v694 = vunpack.c.l.b16 %v320
    %v695 = vunpack.c.h.b16 %v320
    %v696 = vunpack.c.l.b16 %v321
    %v697 = vunpack.c.h.b16 %v321
    %v698 = vunpack.c.l.b16 %v322
    %v699 = vunpack.c.h.b16 %v322
    %v700 = vunpack.c.l.b16 %v323
    %v701 = vunpack.c.h.b16 %v323
    %v702 = vunpack.c.l.b16 %v324
    %v703 = vunpack.c.h.b16 %v324
    %v704 = vunpack.c.l.b16 %v325
    %v705 = vunpack.c.h.b16 %v325
    %v706 = vunpack.c.l.b16 %v326
    %v707 = vunpack.c.h.b16 %v326
    %v708 = vunpack.c.l.b16 %v327
    %v709 = vunpack.c.h.b16 %v327
    %v710 = vunpack.c.l.b16 %v328
    %v711 = vunpack.c.h.b16 %v328
    %v712 = vunpack.c.l.b16 %v329
    %v713 = vunpack.c.h.b16 %v329
    %v714 = vunpack.c.l.b16 %v330
    %v715 = vunpack.c.h.b16 %v330
    %v716 = vunpack.c.l.b16 %v331
    %v717 = vunpack.c.h.b16 %v331
    %v718 = vunpack.c.l.b16 %v332
    %v719 = vunpack.c.h.b16 %v332
    %v720 = vunpack.c.l.b16 %v333
    %v721 = vunpack.c.h.b16 %v333
    %v722 = vunpack.c.l.b16 %v334
    %v723 = vunpack.c.h.b16 %v334
    %v724 = vunpack.c.l.b16 %v335
    %v725 = vunpack.c.h.b16 %v335
    %v726 = vunpack.c.l.b16 %v336
    %v727 = vunpack.c.h.b16 %v336
    %v728 = vunpack.c.l.b16 %v337
    %v729 = vunpack.c.h.b16 %v337
    %v730 = vunpack.c.l.b16 %v338
    %v731 = vunpack.c.h.b16 %v338
    %v732 = vunpack.c.l.b16 %v339
    %v733 = vunpack.c.h.b16 %v339
    %v734 = vunpack.c.l.b16 %v340
    %v735 = vunpack.c.h.b16 %v340
    %v736 = vunpack.c.l.b16 %v341
    %v737 = vunpack.c.h.b16 %v341
    %v738 = vpack.c.b16 %v478, %v474
    %v739 = vpack.c.b16 %v479, %v475
    %v740 = vpack.c.b16 %v480, %v476
    %v741 = vpack.c.b16 %v481, %v477
    %v742 = vpack.c.b16 %v486, %v482
    %v743 = vpack.c.b16 %v487, %v483
    %v744 = vpack.c.b16 %v488, %v484
    %v745 = vpack.c.b16 %v489, %v485
    %v746 = vpack.c.b16 %v494, %v490
    %v747 = vpack.c.b16 %v495, %v491
    %v748 = vpack.c.b16 %v496, %v492
    %v749 = vpack.c.b16 %v497, %v493
    %v750 = vpack.c.b16 %v502, %v498
    %v751 = vpack.c.b16 %v503, %v499
    %v752 = vpack.c.b16 %v504, %v500
    %v753 = vpack.c.b16 %v505, %v501
    %v754 = vpack.c.b16 %v510, %v506
    %v755 = vpack.c.b16 %v511, %v507
    %v756 = vpack.c.b16 %v512, %v508
    %v757 = vpack.c.b16 %v513, %v509
    %v758 = vpack.c.b16 %v518, %v514
    %v759 = vpack.c.b16 %v519, %v515
    %v760 = vpack.c.b16 %v520, %v516
    %v761 = vpack.c.b16 %v521, %v517
    %v762 = vpack.c.b16 %v526, %v522
    %v763 = vpack.c.b16 %v527, %v523
    %v764 = vpack.c.b16 %v528, %v524
    %v765 = vpack.c.b16 %v529, %v525
    %v766 = vpack.c.b16 %v534, %v530
    %v767 = vpack.c.b16 %v535, %v531
    %v768 = vpack.c.b16 %v536, %v532
    %v769 = vpack.c.b16 %v537, %v533
    %v770 = vpack.c.b16 %v542, %v538
    %v771 = vpack.c.b16 %v543, %v539
    %v772 = vpack.c.b16 %v544, %v540
    %v773 = vpack.c.b16 %v545, %v541
    %v774 = vpack.c.b16 %v550, %v546
    %v775 = vpack.c.b16 %v551, %v547
    %v776 = vpack.c.b16 %v552, %v548
    %v777 = vpack.c.b16 %v553, %v549
    %v778 = vpack.c.b16 %v558, %v554
    %v779 = vpack.c.b16 %v559, %v555
    %v780 = vpack.c.b16 %v560, %v556
    %v781 = vpack.c.b16 %v561, %v557
    %v782 = vpack.c.b16 %v566, %v562
    %v783 = vpack.c.b16 %v567, %v563
    %v784 = vpack.c.b16 %v568, %v564
    %v785 = vpack.c.b16 %v569, %v565
    %v786 = vpack.c.b16 %v574, %v570
    %v787 = vpack.c.b16 %v575, %v571
    %v788 = vpack.c.b16 %v576, %v572
    %v789 = vpack.c.b16 %v577, %v573
    %v790 = vpack.c.b16 %v582, %v578
    %v791 = vpack.c.b16 %v583, %v579
    %v792 = vpack.c.b16 %v584, %v580
    %v793 = vpack.c.b16 %v585, %v581
    %v794 = vpack.c.b16 %v590, %v586
    %v795 = vpack.c.b16 %v591, %v587
    %v796 = vpack.c.b16 %v592, %v588
    %v797 = vpack.c.b16 %v593, %v589
    %v798 = vpack.c.b16 %v598, %v594
    %v799 = vpack.c.b16 %v599, %v595
    %v800 = vpack.c.b16 %v600, %v596
    %v801 = vpack.c.b16 %v601, %v597
    %v802 = vpack.c.b16 %v606, %v602
    %v803 = vpack.c.b16 %v607, %v603
    %v804 = vpack.c.b16 %v608, %v604
    %v805 = vpack.c.b16 %v609, %v605
    %v806 = vpack.c.b16 %v614, %v610
    %v807 = vpack.c.b16 %v615, %v611
    %v808 = vpack.c.b16 %v616, %v612
    %v809 = vpack.c.b16 %v617, %v613
    %v810 = vpack.c.b16 %v622, %v618
    %v811 = vpack.c.b16 %v623, %v619
    %v812 = vpack.c.b16 %v624, %v620
    %v813 = vpack.c.b16 %v625, %v621
    %v814 = vpack.c.b16 %v630, %v626
    %v815 = vpack.c.b16 %v631, %v627
    %v816 = vpack.c.b16 %v632, %v628
    %v817 = vpack.c.b16 %v633, %v629
    %v818 = vpack.c.b16 %v638, %v634
    %v819 = vpack.c.b16 %v639, %v635
    %v820 = vpack.c.b16 %v640, %v636
    %v821 = vpack.c.b16 %v641, %v637
    %v822 = vpack.c.b16 %v646, %v642
    %v823 = vpack.c.b16 %v647, %v643
    %v824 = vpack.c.b16 %v648, %v644
    %v825 = vpack.c.b16 %v649, %v645
    %v826 = vpack.c.b16 %v654, %v650
    %v827 = vpack.c.b16 %v655, %v651
    %v828 = vpack.c.b16 %v656, %v652
    %v829 = vpack.c.b16 %v657, %v653
    %v830 = vpack.c.b16 %v662, %v658
    %v831 = vpack.c.b16 %v663, %v659
    %v832 = vpack.c.b16 %v664, %v660
    %v833 = vpack.c.b16 %v665, %v661
    %v834 = vpack.c.b16 %v670, %v666
    %v835 = vpack.c.b16 %v671, %v667
    %v836 = vpack.c.b16 %v672, %v668
    %v837 = vpack.c.b16 %v673, %v669
    %v838 = vpack.c.b16 %v678, %v674
    %v839 = vpack.c.b16 %v679, %v675
    %v840 = vpack.c.b16 %v680, %v676
    %v841 = vpack.c.b16 %v681, %v677
    %v842 = vpack.c.b16 %v686, %v682
    %v843 = vpack.c.b16 %v687, %v683
    %v844 = vpack.c.b16 %v688, %v684
    %v845 = vpack.c.b16 %v689, %v685
    %v846 = vpack.c.b16 %v694, %v690
    %v847 = vpack.c.b16 %v695, %v691
    %v848 = vpack.c.b16 %v696, %v692
    %v849 = vpack.c.b16 %v697, %v693
    %v850 = vpack.c.b16 %v702, %v698
    %v851 = vpack.c.b16 %v703, %v699
    %v852 = vpack.c.b16 %v704, %v700
    %v853 = vpack.c.b16 %v705, %v701
    %v854 = vpack.c.b16 %v710, %v706
    %v855 = vpack.c.b16 %v711, %v707
    %v856 = vpack.c.b16 %v712, %v708
    %v857 = vpack.c.b16 %v713, %v709
    %v858 = vpack.c.b16 %v718, %v714
    %v859 = vpack.c.b16 %v719, %v715
    %v860 = vpack.c.b16 %v720, %v716
    %v861 = vpack.c.b16 %v721, %v717
    %v862 = vpack.c.b16 %v726, %v722
    %v863 = vpack.c.b16 %v727, %v723
    %v864 = vpack.c.b16 %v728, %v724
    %v865 = vpack.c.b16 %v729, %v725
    %v866 = vpack.c.b16 %v734, %v730
    %v867 = vpack.c.b16 %v735, %v731
    %v868 = vpack.c.b16 %v736, %v732
    %v869 = vpack.c.b16 %v737, %v733
    %vm998 = vcmask 72704
    %v1000 = vsel %vm998, %v209, 0
    %vm1002 = vcmask 1043456
    %vm1003 = vcmask 1044480
    %v1004 = vsel %vm1002, 4294967295, 65535
    %v1005 = vsel %vm1003, %v1004, 0
    %v1007 = vand.u32 %v866, %v1005
    %v1010 = vand.u32 %v867, %v1005
    %v1013 = vand.u32 %v868, %v1005
    %v1016 = vand.u32 %v869, %v1005
    %1018 = vmatpush.bf16.msra.mxu0 %v766
    %1019 = vmatpush.bf16.msra.mxu0 %v762
    %1020 = vmatpush.bf16.msra.mxu0 %v758
    %1021 = vmatpush.bf16.msra.mxu0 %v754
    %1022 = vmatpush.bf16.msra.mxu0 %v750
    %1023 = vmatpush.bf16.msra.mxu0 %v746
    %1024 = vmatpush.bf16.msra.mxu0 %v742
    %1025 = vmatpush.bf16.msra.mxu0 %v738
    %1026 = vmatmul.bf16.gmra.mxu0 %v205
    %v1027 = vpop.f32.mrf.mxu0
    %v1028 = vadd.f32 0.0, %v1027
    %v1029 = vpop.f32.mrf.mxu0
    %1030 = vdwg.mxu0
    %1031 = vmatpush.bf16.msra.mxu0 %v798
    %1032 = vmatpush.bf16.msra.mxu0 %v794
    %1033 = vmatpush.bf16.msra.mxu0 %v790
    %1034 = vmatpush.bf16.msra.mxu0 %v786
    %1035 = vmatpush.bf16.msra.mxu0 %v782
    %1036 = vmatpush.bf16.msra.mxu0 %v778
    %1037 = vmatpush.bf16.msra.mxu0 %v774
    %1038 = vmatpush.bf16.msra.mxu0 %v770
    %1039 = vmatmul.bf16.gmra.mxu0 %v206
    %v1040 = vpop.f32.mrf.mxu0
    %v1041 = vadd.f32 %v1028, %v1040
    %v1042 = vpop.f32.mrf.mxu0
    %1043 = vdwg.mxu0
    %1044 = vmatpush.bf16.msra.mxu0 %v830
    %1045 = vmatpush.bf16.msra.mxu0 %v826
    %1046 = vmatpush.bf16.msra.mxu0 %v822
    %1047 = vmatpush.bf16.msra.mxu0 %v818
    %1048 = vmatpush.bf16.msra.mxu0 %v814
    %1049 = vmatpush.bf16.msra.mxu0 %v810
    %1050 = vmatpush.bf16.msra.mxu0 %v806
    %1051 = vmatpush.bf16.msra.mxu0 %v802
    %1052 = vmatmul.bf16.gmra.mxu0 %v207
    %v1053 = vpop.f32.mrf.mxu0
    %v1054 = vadd.f32 %v1041, %v1053
    %v1055 = vpop.f32.mrf.mxu0
    %1056 = vdwg.mxu0
    %1057 = vmatpush.bf16.msra.mxu0 %v862
    %1058 = vmatpush.bf16.msra.mxu0 %v858
    %1059 = vmatpush.bf16.msra.mxu0 %v854
    %1060 = vmatpush.bf16.msra.mxu0 %v850
    %1061 = vmatpush.bf16.msra.mxu0 %v846
    %1062 = vmatpush.bf16.msra.mxu0 %v842
    %1063 = vmatpush.bf16.msra.mxu0 %v838
    %1064 = vmatpush.bf16.msra.mxu0 %v834
    %1065 = vmatmul.bf16.gmra.mxu0 %v208
    %v1066 = vpop.f32.mrf.mxu0
    %v1067 = vadd.f32 %v1054, %v1066
    %v1068 = vpop.f32.mrf.mxu0
    %1069 = vdwg.mxu0
    %1070 = vmatpush.bf16.msra.mxu0 0
    %1071 = vmatpush.bf16.msra.mxu0 0
    %1072 = vmatpush.bf16.msra.mxu0 0
    %1073 = vmatpush.bf16.msra.mxu0 0
    %1074 = vmatpush.bf16.msra.mxu0 0
    %1075 = vmatpush.bf16.msra.mxu0 0
    %1076 = vmatpush.bf16.msra.mxu0 0
    %1077 = vmatpush.bf16.msra.mxu0 %v1007
    %1078 = vmatmul.bf16.gmra.mxu0 %v1000
    %v1079 = vpop.f32.mrf.mxu0
    %v1080 = vadd.f32 %v1067, %v1079
    %v1081 = vpop.f32.mrf.mxu0
    %1082 = vdwg.mxu0
    %1083 = vmatpush.bf16.msra.mxu0 %v767
    %1084 = vmatpush.bf16.msra.mxu0 %v763
    %1085 = vmatpush.bf16.msra.mxu0 %v759
    %1086 = vmatpush.bf16.msra.mxu0 %v755
    %1087 = vmatpush.bf16.msra.mxu0 %v751
    %1088 = vmatpush.bf16.msra.mxu0 %v747
    %1089 = vmatpush.bf16.msra.mxu0 %v743
    %1090 = vmatpush.bf16.msra.mxu0 %v739
    %1091 = vmatmul.bf16.gmra.mxu0 %v205
    %v1092 = vpop.f32.mrf.mxu0
    %v1093 = vadd.f32 0.0, %v1092
    %v1094 = vpop.f32.mrf.mxu0
    %1095 = vdwg.mxu0
    %1096 = vmatpush.bf16.msra.mxu0 %v799
    %1097 = vmatpush.bf16.msra.mxu0 %v795
    %1098 = vmatpush.bf16.msra.mxu0 %v791
    %1099 = vmatpush.bf16.msra.mxu0 %v787
    %1100 = vmatpush.bf16.msra.mxu0 %v783
    %1101 = vmatpush.bf16.msra.mxu0 %v779
    %1102 = vmatpush.bf16.msra.mxu0 %v775
    %1103 = vmatpush.bf16.msra.mxu0 %v771
    %1104 = vmatmul.bf16.gmra.mxu0 %v206
    %v1105 = vpop.f32.mrf.mxu0
    %v1106 = vadd.f32 %v1093, %v1105
    %v1107 = vpop.f32.mrf.mxu0
    %1108 = vdwg.mxu0
    %1109 = vmatpush.bf16.msra.mxu0 %v831
    %1110 = vmatpush.bf16.msra.mxu0 %v827
    %1111 = vmatpush.bf16.msra.mxu0 %v823
    %1112 = vmatpush.bf16.msra.mxu0 %v819
    %1113 = vmatpush.bf16.msra.mxu0 %v815
    %1114 = vmatpush.bf16.msra.mxu0 %v811
    %1115 = vmatpush.bf16.msra.mxu0 %v807
    %1116 = vmatpush.bf16.msra.mxu0 %v803
    %1117 = vmatmul.bf16.gmra.mxu0 %v207
    %v1118 = vpop.f32.mrf.mxu0
    %v1119 = vadd.f32 %v1106, %v1118
    %v1120 = vpop.f32.mrf.mxu0
    %1121 = vdwg.mxu0
    %1122 = vmatpush.bf16.msra.mxu0 %v863
    %1123 = vmatpush.bf16.msra.mxu0 %v859
    %1124 = vmatpush.bf16.msra.mxu0 %v855
    %1125 = vmatpush.bf16.msra.mxu0 %v851
    %1126 = vmatpush.bf16.msra.mxu0 %v847
    %1127 = vmatpush.bf16.msra.mxu0 %v843
    %1128 = vmatpush.bf16.msra.mxu0 %v839
    %1129 = vmatpush.bf16.msra.mxu0 %v835
    %1130 = vmatmul.bf16.gmra.mxu0 %v208
    %v1131 = vpop.f32.mrf.mxu0
    %v1132 = vadd.f32 %v1119, %v1131
    %v1133 = vpop.f32.mrf.mxu0
    %1134 = vdwg.mxu0
    %1135 = vmatpush.bf16.msra.mxu0 0
    %1136 = vmatpush.bf16.msra.mxu0 0
    %1137 = vmatpush.bf16.msra.mxu0 0
    %1138 = vmatpush.bf16.msra.mxu0 0
    %1139 = vmatpush.bf16.msra.mxu0 0
    %1140 = vmatpush.bf16.msra.mxu0 0
    %1141 = vmatpush.bf16.msra.mxu0 0
    %1142 = vmatpush.bf16.msra.mxu0 %v1010
    %1143 = vmatmul.bf16.gmra.mxu0 %v1000
    %v1144 = vpop.f32.mrf.mxu0
    %v1145 = vadd.f32 %v1132, %v1144
    %v1146 = vpop.f32.mrf.mxu0
    %1147 = vdwg.mxu0
    %1148 = vmatpush.bf16.msra.mxu0 %v768
    %1149 = vmatpush.bf16.msra.mxu0 %v764
    %1150 = vmatpush.bf16.msra.mxu0 %v760
    %1151 = vmatpush.bf16.msra.mxu0 %v756
    %1152 = vmatpush.bf16.msra.mxu0 %v752
    %1153 = vmatpush.bf16.msra.mxu0 %v748
    %1154 = vmatpush.bf16.msra.mxu0 %v744
    %1155 = vmatpush.bf16.msra.mxu0 %v740
    %1156 = vmatmul.bf16.gmra.mxu0 %v205
    %v1157 = vpop.f32.mrf.mxu0
    %v1158 = vadd.f32 0.0, %v1157
    %v1159 = vpop.f32.mrf.mxu0
    %1160 = vdwg.mxu0
    %1161 = vmatpush.bf16.msra.mxu0 %v800
    %1162 = vmatpush.bf16.msra.mxu0 %v796
    %1163 = vmatpush.bf16.msra.mxu0 %v792
    %1164 = vmatpush.bf16.msra.mxu0 %v788
    %1165 = vmatpush.bf16.msra.mxu0 %v784
    %1166 = vmatpush.bf16.msra.mxu0 %v780
    %1167 = vmatpush.bf16.msra.mxu0 %v776
    %1168 = vmatpush.bf16.msra.mxu0 %v772
    %1169 = vmatmul.bf16.gmra.mxu0 %v206
    %v1170 = vpop.f32.mrf.mxu0
    %v1171 = vadd.f32 %v1158, %v1170
    %v1172 = vpop.f32.mrf.mxu0
    %1173 = vdwg.mxu0
    %1174 = vmatpush.bf16.msra.mxu0 %v832
    %1175 = vmatpush.bf16.msra.mxu0 %v828
    %1176 = vmatpush.bf16.msra.mxu0 %v824
    %1177 = vmatpush.bf16.msra.mxu0 %v820
    %1178 = vmatpush.bf16.msra.mxu0 %v816
    %1179 = vmatpush.bf16.msra.mxu0 %v812
    %1180 = vmatpush.bf16.msra.mxu0 %v808
    %1181 = vmatpush.bf16.msra.mxu0 %v804
    %1182 = vmatmul.bf16.gmra.mxu0 %v207
    %v1183 = vpop.f32.mrf.mxu0
    %v1184 = vadd.f32 %v1171, %v1183
    %v1185 = vpop.f32.mrf.mxu0
    %1186 = vdwg.mxu0
    %1187 = vmatpush.bf16.msra.mxu0 %v864
    %1188 = vmatpush.bf16.msra.mxu0 %v860
    %1189 = vmatpush.bf16.msra.mxu0 %v856
    %1190 = vmatpush.bf16.msra.mxu0 %v852
    %1191 = vmatpush.bf16.msra.mxu0 %v848
    %1192 = vmatpush.bf16.msra.mxu0 %v844
    %1193 = vmatpush.bf16.msra.mxu0 %v840
    %1194 = vmatpush.bf16.msra.mxu0 %v836
    %1195 = vmatmul.bf16.gmra.mxu0 %v208
    %v1196 = vpop.f32.mrf.mxu0
    %v1197 = vadd.f32 %v1184, %v1196
    %v1198 = vpop.f32.mrf.mxu0
    %1199 = vdwg.mxu0
    %1200 = vmatpush.bf16.msra.mxu0 0
    %1201 = vmatpush.bf16.msra.mxu0 0
    %1202 = vmatpush.bf16.msra.mxu0 0
    %1203 = vmatpush.bf16.msra.mxu0 0
    %1204 = vmatpush.bf16.msra.mxu0 0
    %1205 = vmatpush.bf16.msra.mxu0 0
    %1206 = vmatpush.bf16.msra.mxu0 0
    %1207 = vmatpush.bf16.msra.mxu0 %v1013
    %1208 = vmatmul.bf16.gmra.mxu0 %v1000
    %v1209 = vpop.f32.mrf.mxu0
    %v1210 = vadd.f32 %v1197, %v1209
    %v1211 = vpop.f32.mrf.mxu0
    %1212 = vdwg.mxu0
    %1213 = vmatpush.bf16.msra.mxu0 %v769
    %1214 = vmatpush.bf16.msra.mxu0 %v765
    %1215 = vmatpush.bf16.msra.mxu0 %v761
    %1216 = vmatpush.bf16.msra.mxu0 %v757
    %1217 = vmatpush.bf16.msra.mxu0 %v753
    %1218 = vmatpush.bf16.msra.mxu0 %v749
    %1219 = vmatpush.bf16.msra.mxu0 %v745
    %1220 = vmatpush.bf16.msra.mxu0 %v741
    %1221 = vmatmul.bf16.gmra.mxu0 %v205
    %v1222 = vpop.f32.mrf.mxu0
    %v1223 = vadd.f32 0.0, %v1222
    %v1224 = vpop.f32.mrf.mxu0
    %1225 = vdwg.mxu0
    %1226 = vmatpush.bf16.msra.mxu0 %v801
    %1227 = vmatpush.bf16.msra.mxu0 %v797
    %1228 = vmatpush.bf16.msra.mxu0 %v793
    %1229 = vmatpush.bf16.msra.mxu0 %v789
    %1230 = vmatpush.bf16.msra.mxu0 %v785
    %1231 = vmatpush.bf16.msra.mxu0 %v781
    %1232 = vmatpush.bf16.msra.mxu0 %v777
    %1233 = vmatpush.bf16.msra.mxu0 %v773
    %1234 = vmatmul.bf16.gmra.mxu0 %v206
    %v1235 = vpop.f32.mrf.mxu0
    %v1236 = vadd.f32 %v1223, %v1235
    %v1237 = vpop.f32.mrf.mxu0
    %1238 = vdwg.mxu0
    %1239 = vmatpush.bf16.msra.mxu0 %v833
    %1240 = vmatpush.bf16.msra.mxu0 %v829
    %1241 = vmatpush.bf16.msra.mxu0 %v825
    %1242 = vmatpush.bf16.msra.mxu0 %v821
    %1243 = vmatpush.bf16.msra.mxu0 %v817
    %1244 = vmatpush.bf16.msra.mxu0 %v813
    %1245 = vmatpush.bf16.msra.mxu0 %v809
    %1246 = vmatpush.bf16.msra.mxu0 %v805
    %1247 = vmatmul.bf16.gmra.mxu0 %v207
    %v1248 = vpop.f32.mrf.mxu0
    %v1249 = vadd.f32 %v1236, %v1248
    %v1250 = vpop.f32.mrf.mxu0
    %1251 = vdwg.mxu0
    %1252 = vmatpush.bf16.msra.mxu0 %v865
    %1253 = vmatpush.bf16.msra.mxu0 %v861
    %1254 = vmatpush.bf16.msra.mxu0 %v857
    %1255 = vmatpush.bf16.msra.mxu0 %v853
    %1256 = vmatpush.bf16.msra.mxu0 %v849
    %1257 = vmatpush.bf16.msra.mxu0 %v845
    %1258 = vmatpush.bf16.msra.mxu0 %v841
    %1259 = vmatpush.bf16.msra.mxu0 %v837
    %1260 = vmatmul.bf16.gmra.mxu0 %v208
    %v1261 = vpop.f32.mrf.mxu0
    %v1262 = vadd.f32 %v1249, %v1261
    %v1263 = vpop.f32.mrf.mxu0
    %1264 = vdwg.mxu0
    %1265 = vmatpush.bf16.msra.mxu0 0
    %1266 = vmatpush.bf16.msra.mxu0 0
    %1267 = vmatpush.bf16.msra.mxu0 0
    %1268 = vmatpush.bf16.msra.mxu0 0
    %1269 = vmatpush.bf16.msra.mxu0 0
    %1270 = vmatpush.bf16.msra.mxu0 0
    %1271 = vmatpush.bf16.msra.mxu0 0
    %1272 = vmatpush.bf16.msra.mxu0 %v1016
    %1273 = vmatmul.bf16.gmra.mxu0 %v1000
    %v1274 = vpop.f32.mrf.mxu0
    %v1275 = vadd.f32 %v1262, %v1274
    %v1276 = vpop.f32.mrf.mxu0
    %1277 = vdwg.mxu0
    %v1278 = vld [vmem:[%s2] sm:$0x3]
    %v1280 = vperm.slane %v1278, 0
    %v1281 = vperm.slane %v1278, 1
    %v1284 = vadd.f32 %v1080, %v1280
    %v1285 = vadd.f32 %v1145, %v1281
    %v1286 = vmax.f32 %v1284, 0.0
    %v1287 = vmax.f32 %v1285, 0.0
    %v1288 = vpack.c.bf16 %v1286, %v1286
    %v1289 = vpack.c.bf16 %v1287, %v1287
    %v1290 = vld [vmem:[%s3] sm:$0xf]
    %v1291 = vld [vmem:[%s3 + $0x4] sm:$0xf]
    %v1292 = vld [vmem:[%s3 + $0x8] sm:$0xf]
    %v1293 = vld [vmem:[%s3 + $0xc] sm:$0xf]
    %v1294 = vld [vmem:[%s3 + $0x10] sm:$0xf]
    %v1295 = vld [vmem:[%s3 + $0x14] sm:$0xf]
    %v1296 = vld [vmem:[%s3 + $0x18] sm:$0xf]
    %v1297 = vld [vmem:[%s3 + $0x1c] sm:$0xf]
    %v1298 = vld [vmem:[%s3 + $0x20] sm:$0xf]
    %v1299 = vld [vmem:[%s3 + $0x24] sm:$0xf]
    %v1300 = vld [vmem:[%s3 + $0x28] sm:$0xf]
    %v1301 = vld [vmem:[%s3 + $0x2c] sm:$0xf]
    %v1302 = vld [vmem:[%s3 + $0x30] sm:$0xf]
    %v1303 = vld [vmem:[%s3 + $0x34] sm:$0xf]
    %v1304 = vld [vmem:[%s3 + $0x38] sm:$0xf]
    %v1305 = vld [vmem:[%s3 + $0x3c] sm:$0xf]
    %v1306 = vld [vmem:[%s3 + $0x40] sm:$0xf]
    %v1307 = vld [vmem:[%s3 + $0x44] sm:$0xf]
    %v1308 = vld [vmem:[%s3 + $0x48] sm:$0xf]
    %v1309 = vld [vmem:[%s3 + $0x4c] sm:$0xf]
    %v1310 = vld [vmem:[%s3 + $0x50] sm:$0xf]
    %v1311 = vld [vmem:[%s3 + $0x54] sm:$0xf]
    %v1312 = vld [vmem:[%s3 + $0x58] sm:$0xf]
    %v1313 = vld [vmem:[%s3 + $0x5c] sm:$0xf]
    %v1314 = vld [vmem:[%s3 + $0x60] sm:$0xf]
    %v1315 = vld [vmem:[%s3 + $0x64] sm:$0xf]
    %v1316 = vld [vmem:[%s3 + $0x68] sm:$0xf]
    %v1317 = vld [vmem:[%s3 + $0x6c] sm:$0xf]
    %v1318 = vld [vmem:[%s3 + $0x70] sm:$0xf]
    %v1319 = vld [vmem:[%s3 + $0x74] sm:$0xf]
    %v1320 = vld [vmem:[%s3 + $0x78] sm:$0xf]
    %v1321 = vld [vmem:[%s3 + $0x7c] sm:$0xf]
    %v1322 = vld [vmem:[%s4] sm:$0x1]
    %v1324 = vperm.slane %v1322, 0
    %v1358 = vunpack.c.l.b16 %v1290
    %v1359 = vunpack.c.l.b16 %v1291
    %v1360 = vunpack.c.l.b16 %v1292
    %v1361 = vunpack.c.l.b16 %v1293
    %v1362 = vunpack.c.l.b16 %v1294
    %v1363 = vunpack.c.l.b16 %v1295
    %v1364 = vunpack.c.l.b16 %v1296
    %v1365 = vunpack.c.l.b16 %v1297
    %v1366 = vunpack.c.l.b16 %v1298
    %v1367 = vunpack.c.l.b16 %v1299
    %v1368 = vunpack.c.l.b16 %v1300
    %v1369 = vunpack.c.l.b16 %v1301
    %v1370 = vunpack.c.l.b16 %v1302
    %v1371 = vunpack.c.l.b16 %v1303
    %v1372 = vunpack.c.l.b16 %v1304
    %v1373 = vunpack.c.l.b16 %v1305
    %v1374 = vunpack.c.l.b16 %v1306
    %v1375 = vunpack.c.l.b16 %v1307
    %v1376 = vunpack.c.l.b16 %v1308
    %v1377 = vunpack.c.l.b16 %v1309
    %v1378 = vunpack.c.l.b16 %v1310
    %v1379 = vunpack.c.l.b16 %v1311
    %v1380 = vunpack.c.l.b16 %v1312
    %v1381 = vunpack.c.l.b16 %v1313
    %v1382 = vunpack.c.l.b16 %v1314
    %v1383 = vunpack.c.l.b16 %v1315
    %v1384 = vunpack.c.l.b16 %v1316
    %v1385 = vunpack.c.l.b16 %v1317
    %v1386 = vunpack.c.l.b16 %v1318
    %v1387 = vunpack.c.l.b16 %v1319
    %v1388 = vunpack.c.l.b16 %v1320
    %v1389 = vunpack.c.l.b16 %v1321
    %v1390 = vpack.c.b16 %v1359, %v1358
    %v1391 = vpack.c.b16 %v1361, %v1360
    %v1392 = vpack.c.b16 %v1363, %v1362
    %v1393 = vpack.c.b16 %v1365, %v1364
    %v1394 = vpack.c.b16 %v1367, %v1366
    %v1395 = vpack.c.b16 %v1369, %v1368
    %v1396 = vpack.c.b16 %v1371, %v1370
    %v1397 = vpack.c.b16 %v1373, %v1372
    %v1398 = vpack.c.b16 %v1375, %v1374
    %v1399 = vpack.c.b16 %v1377, %v1376
    %v1400 = vpack.c.b16 %v1379, %v1378
    %v1401 = vpack.c.b16 %v1381, %v1380
    %v1402 = vpack.c.b16 %v1383, %v1382
    %v1403 = vpack.c.b16 %v1385, %v1384
    %v1404 = vpack.c.b16 %v1387, %v1386
    %v1405 = vpack.c.b16 %v1389, %v1388
    %1422 = vmatpush.bf16.msra.mxu0 %v1397
    %1423 = vmatpush.bf16.msra.mxu0 %v1396
    %1424 = vmatpush.bf16.msra.mxu0 %v1395
    %1425 = vmatpush.bf16.msra.mxu0 %v1394
    %1426 = vmatpush.bf16.msra.mxu0 %v1393
    %1427 = vmatpush.bf16.msra.mxu0 %v1392
    %1428 = vmatpush.bf16.msra.mxu0 %v1391
    %1429 = vmatpush.bf16.msra.mxu0 %v1390
    %1430 = vmatmul.bf16.gmra.mxu0 %v1288
    %v1431 = vpop.f32.mrf.mxu0
    %v1432 = vadd.f32 %v1324, %v1431
    %v1433 = vpop.f32.mrf.mxu0
    %1434 = vdwg.mxu0
    %1435 = vmatpush.bf16.msra.mxu0 %v1405
    %1436 = vmatpush.bf16.msra.mxu0 %v1404
    %1437 = vmatpush.bf16.msra.mxu0 %v1403
    %1438 = vmatpush.bf16.msra.mxu0 %v1402
    %1439 = vmatpush.bf16.msra.mxu0 %v1401
    %1440 = vmatpush.bf16.msra.mxu0 %v1400
    %1441 = vmatpush.bf16.msra.mxu0 %v1399
    %1442 = vmatpush.bf16.msra.mxu0 %v1398
    %1443 = vmatmul.bf16.gmra.mxu0 %v1289
    %v1444 = vpop.f32.mrf.mxu0
    %v1445 = vadd.f32 %v1432, %v1444
    %v1446 = vpop.f32.mrf.mxu0
    %1447 = vdwg.mxu0
    %v1448 = vmax.f32 %v1445, 0.0
    %v1449 = vpack.c.bf16 %v1448, %v1448
    %v1450 = vld [vmem:[%s5] sm:$0xf]
    %v1451 = vld [vmem:[%s5 + $0x4] sm:$0xf]
    %v1452 = vld [vmem:[%s5 + $0x8] sm:$0xf]
    %v1453 = vld [vmem:[%s5 + $0xc] sm:$0xf]
    %v1454 = vld [vmem:[%s5 + $0x10] sm:$0xf]
    %v1455 = vld [vmem:[%s5 + $0x14] sm:$0xf]
    %v1456 = vld [vmem:[%s5 + $0x18] sm:$0xf]
    %v1457 = vld [vmem:[%s5 + $0x1c] sm:$0xf]
    %v1458 = vld [vmem:[%s5 + $0x20] sm:$0xf]
    %v1459 = vld [vmem:[%s5 + $0x24] sm:$0xf]
    %v1460 = vld [vmem:[%s5 + $0x28] sm:$0xf]
    %v1461 = vld [vmem:[%s5 + $0x2c] sm:$0xf]
    %v1462 = vld [vmem:[%s5 + $0x30] sm:$0xf]
    %v1463 = vld [vmem:[%s5 + $0x34] sm:$0xf]
    %v1464 = vld [vmem:[%s5 + $0x38] sm:$0xf]
    %v1465 = vld [vmem:[%s5 + $0x3c] sm:$0xf]
    %v1466 = vld [vmem:[#allocation6] sm:$0x1]
    %v1468 = vperm.slane %v1466, 0
    %v1486 = vunpack.c.l.b16 %v1450
    %v1487 = vunpack.c.l.b16 %v1451
    %v1488 = vunpack.c.l.b16 %v1452
    %v1489 = vunpack.c.l.b16 %v1453
    %v1490 = vunpack.c.l.b16 %v1454
    %v1491 = vunpack.c.l.b16 %v1455
    %v1492 = vunpack.c.l.b16 %v1456
    %v1493 = vunpack.c.l.b16 %v1457
    %v1494 = vunpack.c.l.b16 %v1458
    %v1495 = vunpack.c.l.b16 %v1459
    %v1496 = vunpack.c.l.b16 %v1460
    %v1497 = vunpack.c.l.b16 %v1461
    %v1498 = vunpack.c.l.b16 %v1462
    %v1499 = vunpack.c.l.b16 %v1463
    %v1500 = vunpack.c.l.b16 %v1464
    %v1501 = vunpack.c.l.b16 %v1465
    %v1502 = vpack.c.b16 %v1487, %v1486
    %v1503 = vpack.c.b16 %v1489, %v1488
    %v1504 = vpack.c.b16 %v1491, %v1490
    %v1505 = vpack.c.b16 %v1493, %v1492
    %v1506 = vpack.c.b16 %v1495, %v1494
    %v1507 = vpack.c.b16 %v1497, %v1496
    %v1508 = vpack.c.b16 %v1499, %v1498
    %v1509 = vpack.c.b16 %v1501, %v1500
    %1518 = vmatpush.bf16.msra.mxu0 %v1509
    %1519 = vmatpush.bf16.msra.mxu0 %v1508
    %1520 = vmatpush.bf16.msra.mxu0 %v1507
    %1521 = vmatpush.bf16.msra.mxu0 %v1506
    %1522 = vmatpush.bf16.msra.mxu0 %v1505
    %1523 = vmatpush.bf16.msra.mxu0 %v1504
    %1524 = vmatpush.bf16.msra.mxu0 %v1503
    %1525 = vmatpush.bf16.msra.mxu0 %v1502
    %1526 = vmatmul.bf16.gmra.mxu0 %v1449
    %v1527 = vpop.f32.mrf.mxu0
    %v1528 = vadd.f32 %v1468, %v1527
    %v1529 = vpop.f32.mrf.mxu0
    %1530 = vdwg.mxu0
    %v1531 = vmax.f32 %v1528, 0.0
    %v1532 = vpack.c.bf16 %v1531, %v1531
    %v1533 = vld [vmem:[#allocation7] sm:$0xf]
    %v1534 = vld [vmem:[#allocation7 + $0x4] sm:$0xf]
    %v1535 = vld [vmem:[#allocation7 + $0x8] sm:$0xf]
    %v1536 = vld [vmem:[#allocation7 + $0xc] sm:$0xf]
    %v1537 = vld [vmem:[%s8] sm:$0xff]
    %v1538 = vld [vmem:[%s8 + $0x8] sm:$0xff]
    %v1539 = vld [vmem:[%s8 + $0x10] sm:$0xff]
    %v1540 = vld [vmem:[%s8 + $0x18] sm:$0xff]
    %v1545 = vunpack.c.l.b16 %v1537
    %v1546 = vunpack.c.h.b16 %v1537
    %v1547 = vunpack.c.l.b16 %v1538
    %v1548 = vunpack.c.h.b16 %v1538
    %v1549 = vunpack.c.l.b16 %v1539
    %v1550 = vunpack.c.h.b16 %v1539
    %v1551 = vunpack.c.l.b16 %v1540
    %v1552 = vunpack.c.h.b16 %v1540
    %v1553 = vpack.c.b16 %v1547, %v1545
    %v1554 = vpack.c.b16 %v1548, %v1546
    %v1555 = vpack.c.b16 %v1551, %v1549
    %v1556 = vpack.c.b16 %v1552, %v1550
    %vm1561 = vcmask 261120
    %v1563 = vsel %vm1561, %v1532, 0
    %1565 = vmatpush.bf16.msra.mxu0 0
    %1566 = vmatpush.bf16.msra.mxu0 0
    %1567 = vmatpush.bf16.msra.mxu0 0
    %1568 = vmatpush.bf16.msra.mxu0 0
    %1569 = vmatpush.bf16.msra.mxu0 0
    %1570 = vmatpush.bf16.msra.mxu0 0
    %1571 = vmatpush.bf16.msra.mxu0 %v1555
    %1572 = vmatpush.bf16.msra.mxu0 %v1553
    %1573 = vmatmul.bf16.gmra.mxu0 %v1563
    %v1574 = vpop.f32.mrf.mxu0
    %v1575 = vadd.f32 0.0, %v1574
    %v1576 = vpop.f32.mrf.mxu0
    %1577 = vdwg.mxu0
    %1578 = vmatpush.bf16.msra.mxu0 0
    %1579 = vmatpush.bf16.msra.mxu0 0
    %1580 = vmatpush.bf16.msra.mxu0 0
    %1581 = vmatpush.bf16.msra.mxu0 0
    %1582 = vmatpush.bf16.msra.mxu0 0
    %1583 = vmatpush.bf16.msra.mxu0 0
    %1584 = vmatpush.bf16.msra.mxu0 %v1556
    %1585 = vmatpush.bf16.msra.mxu0 %v1554
    %1586 = vmatmul.bf16.gmra.mxu0 %v1563
    %v1587 = vpop.f32.mrf.mxu0
    %v1588 = vadd.f32 0.0, %v1587
    %v1589 = vpop.f32.mrf.mxu0
    %1590 = vdwg.mxu0
    %v1591 = vadd.f32 %v1210, %v1575
    %v1592 = vadd.f32 %v1275, %v1588
    %v1593 = vld [vmem:[%s9] sm:$0x3]
    %v1595 = vperm.slane %v1593, 0
    %v1596 = vperm.slane %v1593, 1
    %v1599 = vadd.f32 %v1591, %v1595
    %v1600 = vadd.f32 %v1592, %v1596
    %v1601 = vmax.f32 %v1599, 0.0
    %v1602 = vmax.f32 %v1600, 0.0
    %v1603 = vpack.c.bf16 %v1601, %v1601
    %v1604 = vpack.c.bf16 %v1602, %v1602
    %v1605 = vld [vmem:[#allocation9] sm:$0xf]
    %v1606 = vld [vmem:[#allocation9 + $0x4] sm:$0xf]
    %v1607 = vld [vmem:[#allocation9 + $0x8] sm:$0xf]
    %v1608 = vld [vmem:[#allocation9 + $0xc] sm:$0xf]
    %v1609 = vld [vmem:[#allocation9 + $0x10] sm:$0xf]
    %v1610 = vld [vmem:[#allocation9 + $0x14] sm:$0xf]
    %v1611 = vld [vmem:[#allocation9 + $0x18] sm:$0xf]
    %v1612 = vld [vmem:[#allocation9 + $0x1c] sm:$0xf]
    %v1613 = vld [vmem:[#allocation9 + $0x20] sm:$0xf]
    %v1614 = vld [vmem:[#allocation9 + $0x24] sm:$0xf]
    %v1615 = vld [vmem:[#allocation9 + $0x28] sm:$0xf]
    %v1616 = vld [vmem:[#allocation9 + $0x2c] sm:$0xf]
    %v1617 = vld [vmem:[#allocation9 + $0x30] sm:$0xf]
    %v1618 = vld [vmem:[#allocation9 + $0x34] sm:$0xf]
    %v1619 = vld [vmem:[#allocation9 + $0x38] sm:$0xf]
    %v1620 = vld [vmem:[#allocation9 + $0x3c] sm:$0xf]
    %v1621 = vld [vmem:[#allocation9 + $0x40] sm:$0xf]
    %v1622 = vld [vmem:[#allocation9 + $0x44] sm:$0xf]
    %v1623 = vld [vmem:[#allocation9 + $0x48] sm:$0xf]
    %v1624 = vld [vmem:[#allocation9 + $0x4c] sm:$0xf]
    %v1625 = vld [vmem:[#allocation9 + $0x50] sm:$0xf]
    %v1626 = vld [vmem:[#allocation9 + $0x54] sm:$0xf]
    %v1627 = vld [vmem:[#allocation9 + $0x58] sm:$0xf]
    %v1628 = vld [vmem:[#allocation9 + $0x5c] sm:$0xf]
    %v1629 = vld [vmem:[#allocation9 + $0x60] sm:$0xf]
    %v1630 = vld [vmem:[#allocation9 + $0x64] sm:$0xf]
    %v1631 = vld [vmem:[#allocation9 + $0x68] sm:$0xf]
    %v1632 = vld [vmem:[#allocation9 + $0x6c] sm:$0xf]
    %v1633 = vld [vmem:[#allocation9 + $0x70] sm:$0xf]
    %v1634 = vld [vmem:[#allocation9 + $0x74] sm:$0xf]
    %v1635 = vld [vmem:[#allocation9 + $0x78] sm:$0xf]
    %v1636 = vld [vmem:[#allocation9 + $0x7c] sm:$0xf]
    %v1637 = vld [vmem:[%s11] sm:$0x1]
    %v1639 = vperm.slane %v1637, 0
    %v1673 = vunpack.c.l.b16 %v1605
    %v1674 = vunpack.c.l.b16 %v1606
    %v1675 = vunpack.c.l.b16 %v1607
    %v1676 = vunpack.c.l.b16 %v1608
    %v1677 = vunpack.c.l.b16 %v1609
    %v1678 = vunpack.c.l.b16 %v1610
    %v1679 = vunpack.c.l.b16 %v1611
    %v1680 = vunpack.c.l.b16 %v1612
    %v1681 = vunpack.c.l.b16 %v1613
    %v1682 = vunpack.c.l.b16 %v1614
    %v1683 = vunpack.c.l.b16 %v1615
    %v1684 = vunpack.c.l.b16 %v1616
    %v1685 = vunpack.c.l.b16 %v1617
    %v1686 = vunpack.c.l.b16 %v1618
    %v1687 = vunpack.c.l.b16 %v1619
    %v1688 = vunpack.c.l.b16 %v1620
    %v1689 = vunpack.c.l.b16 %v1621
    %v1690 = vunpack.c.l.b16 %v1622
    %v1691 = vunpack.c.l.b16 %v1623
    %v1692 = vunpack.c.l.b16 %v1624
    %v1693 = vunpack.c.l.b16 %v1625
    %v1694 = vunpack.c.l.b16 %v1626
    %v1695 = vunpack.c.l.b16 %v1627
    %v1696 = vunpack.c.l.b16 %v1628
    %v1697 = vunpack.c.l.b16 %v1629
    %v1698 = vunpack.c.l.b16 %v1630
    %v1699 = vunpack.c.l.b16 %v1631
    %v1700 = vunpack.c.l.b16 %v1632
    %v1701 = vunpack.c.l.b16 %v1633
    %v1702 = vunpack.c.l.b16 %v1634
    %v1703 = vunpack.c.l.b16 %v1635
    %v1704 = vunpack.c.l.b16 %v1636
    %v1705 = vpack.c.b16 %v1674, %v1673
    %v1706 = vpack.c.b16 %v1676, %v1675
    %v1707 = vpack.c.b16 %v1678, %v1677
    %v1708 = vpack.c.b16 %v1680, %v1679
    %v1709 = vpack.c.b16 %v1682, %v1681
    %v1710 = vpack.c.b16 %v1684, %v1683
    %v1711 = vpack.c.b16 %v1686, %v1685
    %v1712 = vpack.c.b16 %v1688, %v1687
    %v1713 = vpack.c.b16 %v1690, %v1689
    %v1714 = vpack.c.b16 %v1692, %v1691
    %v1715 = vpack.c.b16 %v1694, %v1693
    %v1716 = vpack.c.b16 %v1696, %v1695
    %v1717 = vpack.c.b16 %v1698, %v1697
    %v1718 = vpack.c.b16 %v1700, %v1699
    %v1719 = vpack.c.b16 %v1702, %v1701
    %v1720 = vpack.c.b16 %v1704, %v1703
    %1737 = vmatpush.bf16.msra.mxu0 %v1712
    %1738 = vmatpush.bf16.msra.mxu0 %v1711
    %1739 = vmatpush.bf16.msra.mxu0 %v1710
    %1740 = vmatpush.bf16.msra.mxu0 %v1709
    %1741 = vmatpush.bf16.msra.mxu0 %v1708
    %1742 = vmatpush.bf16.msra.mxu0 %v1707
    %1743 = vmatpush.bf16.msra.mxu0 %v1706
    %1744 = vmatpush.bf16.msra.mxu0 %v1705
    %1745 = vmatmul.bf16.gmra.mxu0 %v1603
    %v1746 = vpop.f32.mrf.mxu0
    %v1747 = vadd.f32 %v1639, %v1746
    %v1748 = vpop.f32.mrf.mxu0
    %1749 = vdwg.mxu0
    %1750 = vmatpush.bf16.msra.mxu0 %v1720
    %1751 = vmatpush.bf16.msra.mxu0 %v1719
    %1752 = vmatpush.bf16.msra.mxu0 %v1718
    %1753 = vmatpush.bf16.msra.mxu0 %v1717
    %1754 = vmatpush.bf16.msra.mxu0 %v1716
    %1755 = vmatpush.bf16.msra.mxu0 %v1715
    %1756 = vmatpush.bf16.msra.mxu0 %v1714
    %1757 = vmatpush.bf16.msra.mxu0 %v1713
    %1758 = vmatmul.bf16.gmra.mxu0 %v1604
    %v1759 = vpop.f32.mrf.mxu0
    %v1760 = vadd.f32 %v1747, %v1759
    %v1761 = vpop.f32.mrf.mxu0
    %1762 = vdwg.mxu0
    %v1763 = vmax.f32 %v1760, 0.0
    %v1764 = vpack.c.bf16 %v1763, %v1763
    %v1765 = vld [vmem:[%s12] sm:$0xf]
    %v1766 = vld [vmem:[%s12 + $0x4] sm:$0xf]
    %v1767 = vld [vmem:[%s12 + $0x8] sm:$0xf]
    %v1768 = vld [vmem:[%s12 + $0xc] sm:$0xf]
    %v1769 = vld [vmem:[%s12 + $0x10] sm:$0xf]
    %v1770 = vld [vmem:[%s12 + $0x14] sm:$0xf]
    %v1771 = vld [vmem:[%s12 + $0x18] sm:$0xf]
    %v1772 = vld [vmem:[%s12 + $0x1c] sm:$0xf]
    %v1773 = vld [vmem:[%s12 + $0x20] sm:$0xf]
    %v1774 = vld [vmem:[%s12 + $0x24] sm:$0xf]
    %v1775 = vld [vmem:[%s12 + $0x28] sm:$0xf]
    %v1776 = vld [vmem:[%s12 + $0x2c] sm:$0xf]
    %v1777 = vld [vmem:[%s12 + $0x30] sm:$0xf]
    %v1778 = vld [vmem:[%s12 + $0x34] sm:$0xf]
    %v1779 = vld [vmem:[%s12 + $0x38] sm:$0xf]
    %v1780 = vld [vmem:[%s12 + $0x3c] sm:$0xf]
    %v1781 = vld [vmem:[%s13] sm:$0x1]
    %v1783 = vperm.slane %v1781, 0
    %v1801 = vunpack.c.l.b16 %v1765
    %v1802 = vunpack.c.l.b16 %v1766
    %v1803 = vunpack.c.l.b16 %v1767
    %v1804 = vunpack.c.l.b16 %v1768
    %v1805 = vunpack.c.l.b16 %v1769
    %v1806 = vunpack.c.l.b16 %v1770
    %v1807 = vunpack.c.l.b16 %v1771
    %v1808 = vunpack.c.l.b16 %v1772
    %v1809 = vunpack.c.l.b16 %v1773
    %v1810 = vunpack.c.l.b16 %v1774
    %v1811 = vunpack.c.l.b16 %v1775
    %v1812 = vunpack.c.l.b16 %v1776
    %v1813 = vunpack.c.l.b16 %v1777
    %v1814 = vunpack.c.l.b16 %v1778
    %v1815 = vunpack.c.l.b16 %v1779
    %v1816 = vunpack.c.l.b16 %v1780
    %v1817 = vpack.c.b16 %v1802, %v1801
    %v1818 = vpack.c.b16 %v1804, %v1803
    %v1819 = vpack.c.b16 %v1806, %v1805
    %v1820 = vpack.c.b16 %v1808, %v1807
    %v1821 = vpack.c.b16 %v1810, %v1809
    %v1822 = vpack.c.b16 %v1812, %v1811
    %v1823 = vpack.c.b16 %v1814, %v1813
    %v1824 = vpack.c.b16 %v1816, %v1815
    %1833 = vmatpush.bf16.msra.mxu0 %v1824
    %1834 = vmatpush.bf16.msra.mxu0 %v1823
    %1835 = vmatpush.bf16.msra.mxu0 %v1822
    %1836 = vmatpush.bf16.msra.mxu0 %v1821
    %1837 = vmatpush.bf16.msra.mxu0 %v1820
    %1838 = vmatpush.bf16.msra.mxu0 %v1819
    %1839 = vmatpush.bf16.msra.mxu0 %v1818
    %1840 = vmatpush.bf16.msra.mxu0 %v1817
    %1841 = vmatmul.bf16.gmra.mxu0 %v1764
    %v1842 = vpop.f32.mrf.mxu0
    %v1843 = vadd.f32 %v1783, %v1842
    %v1844 = vpop.f32.mrf.mxu0
    %1845 = vdwg.mxu0
    %v1846 = vmax.f32 %v1843, 0.0
    %v1847 = vpack.c.bf16 %v1846, %v1846
    %v1848 = vld [vmem:[#allocation10] sm:$0xf]
    %v1849 = vld [vmem:[#allocation10 + $0x4] sm:$0xf]
    %v1850 = vld [vmem:[#allocation10 + $0x8] sm:$0xf]
    %v1851 = vld [vmem:[#allocation10 + $0xc] sm:$0xf]
    %v1856 = vunpack.c.l.b16 %v1848
    %v1857 = vunpack.c.l.b16 %v1849
    %v1858 = vunpack.c.l.b16 %v1850
    %v1859 = vunpack.c.l.b16 %v1851
    %v1860 = vpack.c.b16 %v1857, %v1856
    %v1861 = vpack.c.b16 %v1859, %v1858
    %v1865 = vsel %vm1561, %v1847, 0
    %1867 = vmatpush.bf16.msra.mxu0 0
    %1868 = vmatpush.bf16.msra.mxu0 0
    %1869 = vmatpush.bf16.msra.mxu0 0
    %1870 = vmatpush.bf16.msra.mxu0 0
    %1871 = vmatpush.bf16.msra.mxu0 0
    %1872 = vmatpush.bf16.msra.mxu0 0
    %1873 = vmatpush.bf16.msra.mxu0 %v1861
    %1874 = vmatpush.bf16.msra.mxu0 %v1860
    %1875 = vmatmul.bf16.gmra.mxu0 %v1865
    %v1876 = vpop.f32.mrf.mxu0
    %v1877 = vadd.f32 0.0, %v1876
    %v1878 = vpop.f32.mrf.mxu0
    %1879 = vdwg.mxu0
    %1880 = vmatpush.bf16.msra.mxu0 0
    %1881 = vmatpush.bf16.msra.mxu0 0
    %1882 = vmatpush.bf16.msra.mxu0 0
    %1883 = vmatpush.bf16.msra.mxu0 0
    %1884 = vmatpush.bf16.msra.mxu0 0
    %1885 = vmatpush.bf16.msra.mxu0 0
    %1886 = vmatpush.bf16.msra.mxu0 %v1555
    %1887 = vmatpush.bf16.msra.mxu0 %v1553
    %1888 = vmatmul.bf16.gmra.mxu0 %v1865
    %v1889 = vpop.f32.mrf.mxu0
    %v1890 = vadd.f32 0.0, %v1889
    %v1891 = vpop.f32.mrf.mxu0
    %1892 = vdwg.mxu0
    %1893 = vmatpush.bf16.msra.mxu0 0
    %1894 = vmatpush.bf16.msra.mxu0 0
    %1895 = vmatpush.bf16.msra.mxu0 0
    %1896 = vmatpush.bf16.msra.mxu0 0
    %1897 = vmatpush.bf16.msra.mxu0 0
    %1898 = vmatpush.bf16.msra.mxu0 0
    %1899 = vmatpush.bf16.msra.mxu0 %v1556
    %1900 = vmatpush.bf16.msra.mxu0 %v1554
    %1901 = vmatmul.bf16.gmra.mxu0 %v1865
    %v1902 = vpop.f32.mrf.mxu0
    %v1903 = vadd.f32 0.0, %v1902
    %v1904 = vpop.f32.mrf.mxu0
    %1905 = vdwg.mxu0
    %v1906 = vadd.f32 %v1210, %v1890
    %v1907 = vadd.f32 %v1275, %v1903
    %v1908 = vadd.f32 %v1906, %v1595
    %v1909 = vadd.f32 %v1907, %v1596
    %v1910 = vmax.f32 %v1908, 0.0
    %v1911 = vmax.f32 %v1909, 0.0
    %v1912 = vpack.c.bf16 %v1910, %v1910
    %v1913 = vpack.c.bf16 %v1911, %v1911
    %1914 = vmatpush.bf16.msra.mxu0 %v1712
    %1915 = vmatpush.bf16.msra.mxu0 %v1711
    %1916 = vmatpush.bf16.msra.mxu0 %v1710
    %1917 = vmatpush.bf16.msra.mxu0 %v1709
    %1918 = vmatpush.bf16.msra.mxu0 %v1708
    %1919 = vmatpush.bf16.msra.mxu0 %v1707
    %1920 = vmatpush.bf16.msra.mxu0 %v1706
    %1921 = vmatpush.bf16.msra.mxu0 %v1705
    %1922 = vmatmul.bf16.gmra.mxu0 %v1912
    %v1923 = vpop.f32.mrf.mxu0
    %v1924 = vadd.f32 %v1639, %v1923
    %v1925 = vpop.f32.mrf.mxu0
    %1926 = vdwg.mxu0
    %1927 = vmatpush.bf16.msra.mxu0 %v1720
    %1928 = vmatpush.bf16.msra.mxu0 %v1719
    %1929 = vmatpush.bf16.msra.mxu0 %v1718
    %1930 = vmatpush.bf16.msra.mxu0 %v1717
    %1931 = vmatpush.bf16.msra.mxu0 %v1716
    %1932 = vmatpush.bf16.msra.mxu0 %v1715
    %1933 = vmatpush.bf16.msra.mxu0 %v1714
    %1934 = vmatpush.bf16.msra.mxu0 %v1713
    %1935 = vmatmul.bf16.gmra.mxu0 %v1913
    %v1936 = vpop.f32.mrf.mxu0
    %v1937 = vadd.f32 %v1924, %v1936
    %v1938 = vpop.f32.mrf.mxu0
    %1939 = vdwg.mxu0
    %v1940 = vmax.f32 %v1937, 0.0
    %v1941 = vpack.c.bf16 %v1940, %v1940
    %1942 = vmatpush.bf16.msra.mxu0 %v1824
    %1943 = vmatpush.bf16.msra.mxu0 %v1823
    %1944 = vmatpush.bf16.msra.mxu0 %v1822
    %1945 = vmatpush.bf16.msra.mxu0 %v1821
    %1946 = vmatpush.bf16.msra.mxu0 %v1820
    %1947 = vmatpush.bf16.msra.mxu0 %v1819
    %1948 = vmatpush.bf16.msra.mxu0 %v1818
    %1949 = vmatpush.bf16.msra.mxu0 %v1817
    %1950 = vmatmul.bf16.gmra.mxu0 %v1941
    %v1951 = vpop.f32.mrf.mxu0
    %v1952 = vadd.f32 %v1783, %v1951
    %v1953 = vpop.f32.mrf.mxu0
    %1954 = vdwg.mxu0
    %v1955 = vmax.f32 %v1952, 0.0
    %v1956 = vpack.c.bf16 %v1955, %v1955
    %v1957 = vld [vmem:[#allocation12] sm:$0xf]
    %v1958 = vld [vmem:[#allocation12 + $0x4] sm:$0xf]
    %v1959 = vld [vmem:[#allocation12 + $0x8] sm:$0xf]
    %v1960 = vld [vmem:[#allocation12 + $0xc] sm:$0xf]
    %v1965 = vunpack.c.l.b16 %v1957
    %v1966 = vunpack.c.l.b16 %v1958
    %v1967 = vunpack.c.l.b16 %v1959
    %v1968 = vunpack.c.l.b16 %v1960
    %v1969 = vpack.c.b16 %v1966, %v1965
    %v1970 = vpack.c.b16 %v1968, %v1967
    %v1974 = vsel %vm1561, %v1956, 0
    %1976 = vmatpush.bf16.msra.mxu0 0
    %1977 = vmatpush.bf16.msra.mxu0 0
    %1978 = vmatpush.bf16.msra.mxu0 0
    %1979 = vmatpush.bf16.msra.mxu0 0
    %1980 = vmatpush.bf16.msra.mxu0 0
    %1981 = vmatpush.bf16.msra.mxu0 0
    %1982 = vmatpush.bf16.msra.mxu0 %v1970
    %1983 = vmatpush.bf16.msra.mxu0 %v1969
    %1984 = vmatmul.bf16.gmra.mxu0 %v1974
    %v1985 = vpop.f32.mrf.mxu0
    %v1986 = vadd.f32 0.0, %v1985
    %v1987 = vpop.f32.mrf.mxu0
    %1988 = vdwg.mxu0
    %v1993 = vunpack.c.l.b16 %v1533
    %v1994 = vunpack.c.l.b16 %v1534
    %v1995 = vunpack.c.l.b16 %v1535
    %v1996 = vunpack.c.l.b16 %v1536
    %v1997 = vpack.c.b16 %v1994, %v1993
    %v1998 = vpack.c.b16 %v1996, %v1995
    %2001 = vmatpush.bf16.msra.mxu0 0
    %2002 = vmatpush.bf16.msra.mxu0 0
    %2003 = vmatpush.bf16.msra.mxu0 0
    %2004 = vmatpush.bf16.msra.mxu0 0
    %2005 = vmatpush.bf16.msra.mxu0 0
    %2006 = vmatpush.bf16.msra.mxu0 0
    %2007 = vmatpush.bf16.msra.mxu0 %v1998
    %2008 = vmatpush.bf16.msra.mxu0 %v1997
    %2009 = vmatmul.bf16.gmra.mxu0 %v1563
    %v2010 = vpop.f32.mrf.mxu0
    %v2011 = vadd.f32 %v1877, %v2010
    %v2012 = vpop.f32.mrf.mxu0
    %2013 = vdwg.mxu0
    %v2014 = vadd.f32 %v2011, %v1986
    %v2015 = vld [vmem:[%s16] sm:$0x1]
    %v2017 = vperm.slane %v2015, 0
    %v2019 = vadd.f32 %v2014, %v2017
    %2020 = vst [vmem:[#allocation13] sm:$0xff] %v2019
    // Predicated region
    $region98: #{net_mlp_unrolled.1} parent=1 // pred_check
      _
    $region99: #{net_mlp_unrolled.1} parent=1 // pred_check_branch
      %2022 = sbr.rel (0) target = $region101
    $region100: #{net_mlp_unrolled.1} parent=1 // pred_region
      // Predicated region
      $region102: #{net_mlp_unrolled.1} parent=100 // pred_check
        _
      $region103: #{net_mlp_unrolled.1} parent=100 // pred_check_branch
        %2024 = sbr.rel (0) target = $region105
      $region104: #{net_mlp_unrolled.1} parent=100 // pred_region
        // Predicated region
        $region106: #{net_mlp_unrolled.1} parent=104 // pred_check
          _
        $region107: #{net_mlp_unrolled.1} parent=104 // pred_check_branch
          %2026 = sbr.rel target = $region109
        $region108: #{net_mlp_unrolled.1} parent=104 // pred_region
          // Predicated region
          $region121: #{net_mlp_unrolled.1} parent=108 // pred_check
            _
          $region122: #{net_mlp_unrolled.1} parent=108 // pred_check_branch
            %2042 = sbr.rel (0) target = $region124
          $region123: #{net_mlp_unrolled.1} parent=108 // pred_region
            %s2044 = ssub.s32 4, 1
            loop: start=0, step=1, limit=1
            $region125: #{net_mlp_unrolled.1} parent=123 // loop_pre_header
              _
            $region126: #{net_mlp_unrolled.1} parent=123 // loop_header
              %s2046 = sphi 0, %s2050
              %p2047 = scmp.ge.s32.totalorder %s2046, 1
              %s2051 = sphi [#allocation13], [#allocation13]
              %s2052 = sphi %s17, %s17
            $region127: #{net_mlp_unrolled.1} parent=123 // loop_header_branch
              %2049 = sbr.rel (%p2047) target = $region131
            $region128: #{net_mlp_unrolled.1} parent=123 // loop_body
              %v2053 = vld [vmem:[%s2051] sm:%s2044]
              %2054 = vst [vmem:[%s2052] sm:%s2044] %v2053
            $region129: #{net_mlp_unrolled.1} parent=123 // loop_footer
              %s2050 = sadd.s32 1, %s2046
            $region130: #{net_mlp_unrolled.1} parent=123 // loop_footer_branch
              %2045 = sbr.rel target = $region126
            $region131: #{net_mlp_unrolled.1} parent=123 // loop_exit
              _
          $region124: #{net_mlp_unrolled.1} parent=108 // pred_fallthru
            _
        $region109: #{net_mlp_unrolled.1} parent=104 // pred_fallthru
          _
        // Predicated region
        $region110: #{net_mlp_unrolled.1} parent=104 // pred_check
          _
        $region111: #{net_mlp_unrolled.1} parent=104 // pred_check_branch
          %2028 = sbr.rel (0) target = $region113
        $region112: #{net_mlp_unrolled.1} parent=104 // pred_region
          %s2030 = ssub.s32 4, 1
          loop: start=0, step=1, limit=1
          $region114: #{net_mlp_unrolled.1} parent=112 // loop_pre_header
            _
          $region115: #{net_mlp_unrolled.1} parent=112 // loop_header
            %s2032 = sphi 0, %s2036
            %p2033 = scmp.ge.s32.totalorder %s2032, 1
            %s2037 = sphi [#allocation13], [#allocation13]
            %s2038 = sphi %s17, %s17
          $region116: #{net_mlp_unrolled.1} parent=112 // loop_header_branch
            %2035 = sbr.rel (%p2033) target = $region120
          $region117: #{net_mlp_unrolled.1} parent=112 // loop_body
            %v2039 = vld [vmem:[%s2037] sm:%s2030]
            %2040 = vst [vmem:[%s2038] sm:%s2030] %v2039
          $region118: #{net_mlp_unrolled.1} parent=112 // loop_footer
            %s2036 = sadd.s32 1, %s2032
          $region119: #{net_mlp_unrolled.1} parent=112 // loop_footer_branch
            %2031 = sbr.rel target = $region115
          $region120: #{net_mlp_unrolled.1} parent=112 // loop_exit
            _
        $region113: #{net_mlp_unrolled.1} parent=104 // pred_fallthru
          _
      $region105: #{net_mlp_unrolled.1} parent=100 // pred_fallthru
        _
      %2055 = vnop
    $region101: #{net_mlp_unrolled.1} parent=1 // pred_fallthru
      _
    // Predicated region
    $region132: #{net_mlp_unrolled.1} parent=1 // pred_check
      _
    $region133: #{net_mlp_unrolled.1} parent=1 // pred_check_branch
      %2057 = sbr.rel (0) target = $region135
    $region134: #{net_mlp_unrolled.1} parent=1 // pred_region
      _
    $region135: #{net_mlp_unrolled.1} parent=1 // pred_fallthru
      _
    %2058 = vsyncpa [#allocation3], 1
    %2059 = vsyncpa [#allocation5], 1
    %2060 = vsyncpa [#allocation8], 1
    %2061 = vsyncpa [#allocation11], 1

</llo_original>
